<compile_context>
chip_gen: v5e
topology: v5e:2x2
jax: 0.10.0
libtpu: 0.0.40
codegen_flags: <defaults>
</compile_context>

<pallas_src>
import functools

import numpy as np
import jax
import jax.numpy as jnp
from jax import lax
from jax.experimental import pallas as pl
from jax.experimental.pallas import tpu as pltpu

NEG_INF = -1e30  # finite stand-in for float('-inf') in the additive mask


# ----------------------------------------------------------------------------
# Kernel
# ----------------------------------------------------------------------------
def _layer_norm(x, w, b, eps=1e-5):
    mu = jnp.mean(x, axis=-1, keepdims=True)
    var = jnp.mean((x - mu) ** 2, axis=-1, keepdims=True)
    return (x - mu) * lax.rsqrt(var + eps) * w + b


def _fused_encoder_kernel(inp_ref,
                          xyw1_ref, xyb1_ref, xyw2_ref, xyb2_ref,
                          wqkv_ref, wo_ref, wf1_ref, wf2_ref, vec_ref,
                          o_ref,
                          x_ref, ctx_ref, mask_ref,
                          *, num_heads, num_ctx, num_tar, block_m, seq, dz, dff,
                          dinp, compute_dtype):
    """Grid = (batch_blocks, num_layers).

    The layer axis is serial ("arbitrary"); the [rows, dz] activations live in
    the x_ref VMEM scratch across all layers of a batch block, so they never
    round-trip through HBM between layers.  Per-layer weights stream in along
    the layer axis; the xy-encoder MLP and the attention mask are computed at
    l == 0.  The output (target rows only) is stored at the last layer.
    """
    l = pl.program_id(1)
    rows = block_m * seq
    hd = dz // num_heads
    scale = 1.0 / float(np.sqrt(hd))
    use_bf16 = np.dtype(compute_dtype) == np.dtype(jnp.bfloat16)

    def mm(a, w):
        # bf16 (or f32) MXU operands, f32 accumulation.
        return jnp.dot(a.astype(compute_dtype), w.astype(compute_dtype),
                       preferred_element_type=jnp.float32)

    # ---- l == 0: mask + fused xy-encoder MLP seed the resident state --------
    @pl.when(l == 0)
    def _():
        # Additive mask built once per batch block (cheap iota math; kept in a
        # scratch so it is NOT recomputed on every layer step).  Computed per
        # batch block (not at b == 0 only) so per-core scratches stay correct
        # when the batch axis is sharded across TensorCores.
        num_all = num_ctx + num_tar
        ri = lax.broadcasted_iota(jnp.int32, (seq, seq), 0)
        ci = lax.broadcasted_iota(jnp.int32, (seq, seq), 1)
        ctx_col = ci < num_ctx
        tar_col = (ci >= num_ctx) & (ci < num_all)
        allowed = (ctx_col & ((ri >= num_ctx) | (ci <= ri))) | \
                  (tar_col & (((ri >= num_ctx) & (ri < num_all) & (ci <= ri)) |
                              ((ri >= num_all) & (ci < ri - num_tar))))
        mask_ref[...] = jnp.where(allowed, 0.0, NEG_INF).astype(jnp.float32)

        # xy-encoder MLP -> resident activations.
        xin = inp_ref[...].reshape(rows, dinp)
        h0 = jnp.maximum(mm(xin, xyw1_ref[...]) + xyb1_ref[...], 0.0)
        x_ref[...] = mm(h0, xyw2_ref[...]) + xyb2_ref[...]

    x = x_ref[...]                                  # resident activations (f32)

    # Packed per-layer small params: one [8, dmax] tile streamed per layer.
    vec = vec_ref[0]
    ln1w = vec[0:1, :dz]
    ln1b = vec[1:2, :dz]
    bo = vec[2:3, :dz]
    ln2w = vec[3:4, :dz]
    ln2b = vec[4:5, :dz]
    bf2 = vec[5:6, :dz]
    bqkv = vec[6:7, :3 * dz]
    bf1 = vec[7:8, :dff]

    # ---- masked multi-head self-attention (pre-norm) ----
    h = _layer_norm(x, ln1w, ln1b)
    qkv = mm(h, wqkv_ref[0]) + bqkv                 # fused Q|K|V projection
    # Fold 1/sqrt(hd) into q (rows*dz mults instead of heads*seq^2 per layer).
    q = (qkv[:, 0 * dz:1 * dz] * scale).reshape(block_m, seq, dz)
    k = qkv[:, 1 * dz:2 * dz].reshape(block_m, seq, dz)
    v = qkv[:, 2 * dz:3 * dz].reshape(block_m, seq, dz)

    # Hoist the mask broadcast out of the head loop (no per-head re-broadcast).
    maskb = jnp.broadcast_to(mask_ref[...], (block_m, seq, seq))

    # TODO(synk): for long sequences, tile attention over KV blocks (online
    # softmax) instead of materializing the full [seq, seq] scores per head.
    for hh in range(num_heads):                     # static unroll over heads
        sl = slice(hh * hd, (hh + 1) * hd)
        qh = q[:, :, sl].astype(compute_dtype)
        kh = k[:, :, sl].astype(compute_dtype)
        vh = v[:, :, sl].astype(compute_dtype)
        s = jnp.einsum('bqd,bkd->bqk', qh, kh,
                       preferred_element_type=jnp.float32) + maskb
        s = s - jnp.max(s, axis=-1, keepdims=True)
        p = jnp.exp(s)
        p = p * pl.reciprocal(jnp.sum(p, axis=-1, keepdims=True), approx=use_bf16)
        oh = jnp.einsum('bqk,bkd->bqd', p.astype(compute_dtype), vh,
                        preferred_element_type=jnp.float32)
        # Lane-slice store into the context scratch: bounds this head's live
        # range and lets W_o be applied as a single full-K matmul below.
        ctx_ref[:, sl] = oh.reshape(rows, hd).astype(compute_dtype)

    # One [rows, dz] x [dz, dz] output projection (full-K MXU fill).
    x = x + mm(ctx_ref[...], wo_ref[0]) + bo

    # ---- feed-forward (pre-norm) ----
    h2 = _layer_norm(x, ln2w, ln2b)
    f = jnp.maximum(mm(h2, wf1_ref[0]) + bf1, 0.0)
    x = x + mm(f, wf2_ref[0]) + bf2

    x_ref[...] = x                                  # stays resident in VMEM

    # Only the target rows are consumed downstream: write them once, at the
    # last layer (output block index is constant along l -> single writeback).
    @pl.when(l == pl.num_programs(1) - 1)
    def _():
        o_ref[...] = x.reshape(block_m, seq, dz)[:, seq - num_tar:, :]


# ----------------------------------------------------------------------------
# VMEM budget & block sizing
# ----------------------------------------------------------------------------
@functools.lru_cache(maxsize=1)
def _vmem_budget_bytes():
    """Physical-VMEM-aware per-step budget (also used as vmem_limit_bytes)."""
    phys = 64 << 20  # conservative fallback = v7x per-TensorCore VMEM
    try:
        info = pltpu.get_tpu_info()
        for name in ("vmem_capacity_bytes", "vmem_size_bytes", "vmem_bytes"):
            v = getattr(info, name, None)
            if v:
                phys = int(v)
                break
    except Exception:
        pass
    # Leave headroom for compiler-internal scratch; never ask for 100+ MB.
    return int(min(phys * 3 // 4, 100 << 20))


def _pick_block_m(m, seq, dz, dff, dinp, nt, cbytes, layer_bytes, inv_bytes,
                  budget):
    """Batch elements per grid step, sized against the real VMEM budget.

    Working-set model per batch element: resident f32 activations, attention
    context scratch, double-buffered input block, f32 QKV / FF intermediates,
    two live [seq, seq] f32 score tensors, double-buffered output block.
    Fixed terms: mask scratch, double-buffered streamed layer weights and the
    grid-invariant xy-encoder weights.
    """
    fixed = seq * seq * 4 + 2 * layer_bytes + 2 * inv_bytes
    per = seq * (dz * 4 + dz * cbytes + 2 * dinp * 4 + 3 * dz * 4 + dff * 4
                 + 2 * seq * 4) + 2 * nt * dz * 4
    avail = int(max(budget - fixed, per) * 0.85)
    cap = max(1, m // 2)       # >=2 batch grid steps for 2-TC chips (v7x)
    bm = int(max(1, min(cap, avail // per)))
    while m % bm:
        bm -= 1
    return bm


# ----------------------------------------------------------------------------
# Pallas wrapper
# ----------------------------------------------------------------------------
def _fused_encoder_pallas(inp, xyp, lyr, *, num_heads, num_ctx, num_tar,
                          block_m, compute_dtype, vmem_limit_bytes):
    m, n, dinp = inp.shape
    dz = xyp["w2"].shape[1]
    L = lyr["wqkv"].shape[0]
    dff = lyr["wf1"].shape[2]
    rows = block_m * n
    hd = dz // num_heads

    kernel = functools.partial(
        _fused_encoder_kernel,
        num_heads=num_heads, num_ctx=num_ctx, num_tar=num_tar,
        block_m=block_m, seq=n, dz=dz, dff=dff, dinp=dinp,
        compute_dtype=compute_dtype)

    def inv_spec(arr):
        nd = arr.ndim
        # Grid-invariant: block index never changes, so it is not re-fetched.
        return pl.BlockSpec(arr.shape, lambda b, l, _nd=nd: (0,) * _nd)

    def layer_spec(arr):
        nd = arr.ndim
        return pl.BlockSpec((1,) + arr.shape[1:],
                            lambda b, l, _nd=nd: (l,) + (0,) * (_nd - 1))

    inv_args = [xyp["w1"], xyp["b1"], xyp["w2"], xyp["b2"]]
    layer_args = [lyr["wqkv"], lyr["wo"], lyr["wf1"], lyr["wf2"], lyr["vec"]]

    in_specs = ([pl.BlockSpec((block_m, n, dinp), lambda b, l: (b, 0, 0))]
                + [inv_spec(a) for a in inv_args]
                + [layer_spec(a) for a in layer_args])
    out_spec = pl.BlockSpec((block_m, num_tar, dz), lambda b, l: (b, 0, 0))

    scratch_shapes = [
        pltpu.VMEM((rows, dz), jnp.float32),        # resident activations
        pltpu.VMEM((rows, dz), compute_dtype),      # attention context
        pltpu.VMEM((n, n), jnp.float32),            # additive mask
    ]

    # Advisory cost estimate so XLA schedules the surrounding glue sensibly.
    batch_blocks = m // block_m
    tok = m * n
    flops = 2 * tok * (dinp * dz + dz * dz)                       # xy-encoder MLP
    flops += L * (2 * tok * (dz * 3 * dz + dz * dz + 2 * dz * dff)
                  + 4 * m * num_heads * n * n * hd)               # proj + attention
    transcendentals = L * m * num_heads * n * n                   # softmax exps
    weight_bytes = sum(int(np.prod(a.shape)) * a.dtype.itemsize
                       for a in inv_args + layer_args)
    bytes_accessed = int(inp.size * inp.dtype.itemsize
                         + m * num_tar * dz * 4
                         + batch_blocks * weight_bytes)           # re-streamed / block

    return pl.pallas_call(
        kernel,
        out_shape=jax.ShapeDtypeStruct((m, num_tar, dz), jnp.float32),
        grid=(batch_blocks, L),
        in_specs=in_specs,
        out_specs=out_spec,
        scratch_shapes=scratch_shapes,
        compiler_params=pltpu.CompilerParams(
            dimension_semantics=("parallel", "arbitrary"),
            vmem_limit_bytes=int(vmem_limit_bytes)),
        cost_estimate=pl.CostEstimate(flops=int(flops),
                                      transcendentals=int(transcendentals),
                                      bytes_accessed=bytes_accessed),
    )(inp, *inv_args, *layer_args)


def _pack_params(params, din, din_p, compute_dtype):
    """Pad W1 rows, fuse Q|K|V, stack big per-layer matrices along a leading L
    axis (cast to the compute dtype), and pack the 10 tiny per-layer vectors
    into one [L, 8, dmax] f32 array so each layer step issues one small DMA."""
    xy = params["xy"]
    w1 = xy["w1"]
    if din_p != din:
        w1 = jnp.pad(w1, ((0, din_p - din), (0, 0)))
    xyp = {"w1": w1.astype(compute_dtype), "b1": xy["b1"],
           "w2": xy["w2"].astype(compute_dtype), "b2": xy["b2"]}

    layers = params["layers"]
    dz = layers[0]["wq"].shape[0]
    dff = layers[0]["wf1"].shape[1]
    dmax = max(3 * dz, dff, dz)

    def row(v):
        v = v.reshape(1, -1).astype(jnp.float32)
        return jnp.pad(v, ((0, 0), (0, dmax - v.shape[1])))

    def packed_vec(lp):
        bqkv = jnp.concatenate([lp["bq"], lp["bk"], lp["bv"]], axis=1)
        return jnp.concatenate([
            row(lp["ln1_w"]), row(lp["ln1_b"]), row(lp["bo"]),
            row(lp["ln2_w"]), row(lp["ln2_b"]), row(lp["bf2"]),
            row(bqkv), row(lp["bf1"]),
        ], axis=0)                                   # [8, dmax]

    lyr = {
        "wqkv": jnp.stack([jnp.concatenate([lp["wq"], lp["wk"], lp["wv"]], axis=1)
                           for lp in layers], axis=0).astype(compute_dtype),
        "wo": jnp.stack([lp["wo"] for lp in layers], axis=0).astype(compute_dtype),
        "wf1": jnp.stack([lp["wf1"] for lp in layers], axis=0).astype(compute_dtype),
        "wf2": jnp.stack([lp["wf2"] for lp in layers], axis=0).astype(compute_dtype),
        "vec": jnp.stack([packed_vec(lp) for lp in layers], axis=0),  # [L, 8, dmax]
    }
    return xyp, lyr


# ----------------------------------------------------------------------------
# Glue (input / mask construction) — mirrors the PyTorch code
# ----------------------------------------------------------------------------
def create_mask(num_ctx, num_tar):
    """Dense mask — used only by the pure-JAX reference (the kernel builds it
    in-VMEM once per batch block)."""
    num_all = num_ctx + num_tar
    n = num_all + num_tar
    i = jnp.arange(n)[:, None]
    j = jnp.arange(n)[None, :]
    mask = jnp.full((n, n), NEG_INF, dtype=jnp.float32)
    mask = jnp.where(j < num_ctx, 0.0, mask)
    mask = jnp.where((i < num_ctx) & (j < num_ctx) & (j > i), NEG_INF, mask)
    blk2 = (i >= num_ctx) & (i < num_all) & (j >= num_ctx) & (j < num_all)
    mask = jnp.where(blk2 & (j <= i), 0.0, mask)
    blk3 = (i >= num_all) & (j >= num_ctx) & (j < num_all)
    mask = jnp.where(blk3 & ((j - num_ctx) < (i - num_all)), 0.0, mask)
    return mask, num_tar


def construct_input(xc, yc_f, xt, yt_f):
    x_y_ctx = jnp.concatenate([xc, yc_f], axis=-1)
    x_y_tar = jnp.concatenate([xt, yt_f], axis=-1)
    x_0_tar = jnp.concatenate([xt, jnp.zeros_like(yt_f)], axis=-1)
    return jnp.concatenate([x_y_ctx, x_y_tar, x_0_tar], axis=1)


def ar_inc_tnp_encoder_forward(params, xc, yc, xt, yt, num_heads,
                               compute_dtype=jnp.bfloat16, block_m=None):
    """Returns the target-token embeddings [m, nt, dz] (== out[:, -nt:] in the
    PyTorch module).  jit-friendly: no host syncs or probing in this path."""
    nc, nt = xc.shape[1], xt.shape[1]
    yc_f = jnp.concatenate([yc, jnp.zeros(yc.shape[:-1] + (1,), yc.dtype)], axis=-1)
    yt_f = jnp.concatenate([yt, jnp.ones(yt.shape[:-1] + (1,), yt.dtype)], axis=-1)
    # x_encoder / y_encoder are Identity
    inp = construct_input(xc, yc_f, xt, yt_f)                  # [m, n, dx+dy+1]
    din = inp.shape[-1]
    din_p = int(-(-din // 8) * 8)                              # pad tiny feature dim
    if din_p != din:
        inp = jnp.pad(inp, ((0, 0), (0, 0), (0, din_p - din)))
    xyp, lyr = _pack_params(params, din, din_p, compute_dtype)

    m, n, _ = inp.shape
    dz = xyp["w2"].shape[1]
    dff = lyr["wf1"].shape[2]
    cbytes = jnp.dtype(compute_dtype).itemsize

    layer_bytes = sum(int(np.prod(lyr[k].shape[1:])) * lyr[k].dtype.itemsize
                      for k in ("wqkv", "wo", "wf1", "wf2", "vec"))
    inv_bytes = sum(int(np.prod(a.shape)) * a.dtype.itemsize
                    for a in (xyp["w1"], xyp["b1"], xyp["w2"], xyp["b2"]))
    budget = _vmem_budget_bytes()
    if block_m is None:
        block_m = _pick_block_m(m, n, dz, dff, din_p, nt, cbytes,
                                layer_bytes, inv_bytes, budget)

    return _fused_encoder_pallas(
        inp, xyp, lyr, num_heads=num_heads, num_ctx=nc, num_tar=nt,
        block_m=block_m, compute_dtype=compute_dtype, vmem_limit_bytes=budget)


# ----------------------------------------------------------------------------
# Pure-JAX f32 reference (same math, no Pallas) for verification
# ----------------------------------------------------------------------------
def _ref_layer_single(x, mask, p, num_heads):
    n, dz = x.shape
    hd = dz // num_heads
    scale = 1.0 / float(np.sqrt(hd))
    h = _layer_norm(x, p["ln1_w"], p["ln1_b"])
    q = h @ p["wq"] + p["bq"]
    k = h @ p["wk"] + p["bk"]
    v = h @ p["wv"] + p["bv"]
    outs = []
    for hh in range(num_heads):
        sl = slice(hh * hd, (hh + 1) * hd)
        s = (q[:, sl] @ k[:, sl].T) * scale + mask
        outs.append(jax.nn.softmax(s, axis=-1) @ v[:, sl])
    attn = jnp.concatenate(outs, axis=-1)
    x = x + attn @ p["wo"] + p["bo"]
    h2 = _layer_norm(x, p["ln2_w"], p["ln2_b"])
    ff = jnp.maximum(h2 @ p["wf1"] + p["bf1"], 0.0)
    return x + ff @ p["wf2"] + p["bf2"]


def ref_forward(params, xc, yc, xt, yt, num_heads):
    with jax.default_matmul_precision("float32"):
        nc, nt = xc.shape[1], xt.shape[1]
        yc_f = jnp.concatenate([yc, jnp.zeros(yc.shape[:-1] + (1,), yc.dtype)], axis=-1)
        yt_f = jnp.concatenate([yt, jnp.ones(yt.shape[:-1] + (1,), yt.dtype)], axis=-1)
        inp = construct_input(xc, yc_f, xt, yt_f)
        mask, _ = create_mask(nc, nt)
        xy = params["xy"]
        emb = jnp.maximum(inp @ xy["w1"] + xy["b1"], 0.0) @ xy["w2"] + xy["b2"]
        x = emb
        for lp in params["layers"]:
            x = jax.vmap(lambda xb: _ref_layer_single(xb, mask, lp, num_heads))(x)
        return x[:, -nt:]


# ----------------------------------------------------------------------------
# Deterministic parameter init
# ----------------------------------------------------------------------------
def init_params(key, din, dz, dff, num_layers):
    def lin(k, fi, fo):
        w = (jax.random.normal(k, (fi, fo), jnp.float32) / np.sqrt(fi)).astype(jnp.float32)
        b = jnp.zeros((1, fo), jnp.float32)
        return w, b

    keys = jax.random.split(key, 1 + num_layers)
    k1, k2 = jax.random.split(keys[0])
    w1, b1 = lin(k1, din, dz)
    w2, b2 = lin(k2, dz, dz)
    params = {"xy": {"w1": w1, "b1": b1, "w2": w2, "b2": b2}, "layers": []}
    for l in range(num_layers):
        ks = jax.random.split(keys[1 + l], 6)
        wq, bq = lin(ks[0], dz, dz)
        wk, bk = lin(ks[1], dz, dz)
        wv, bv = lin(ks[2], dz, dz)
        wo, bo = lin(ks[3], dz, dz)
        wf1, bf1 = lin(ks[4], dz, dff)
        wf2, bf2 = lin(ks[5], dff, dz)
        params["layers"].append({
            "ln1_w": jnp.ones((1, dz), jnp.float32), "ln1_b": jnp.zeros((1, dz), jnp.float32),
            "wq": wq, "bq": bq, "wk": wk, "bk": bk, "wv": wv, "bv": bv,
            "wo": wo, "bo": bo,
            "ln2_w": jnp.ones((1, dz), jnp.float32), "ln2_b": jnp.zeros((1, dz), jnp.float32),
            "wf1": wf1, "bf1": bf1, "wf2": wf2, "bf2": bf2,
        })
    return params


# ----------------------------------------------------------------------------
if __name__ == "__main__":
    m, nc, nt = 2, 8, 4
    dx, dy = 2, 1
    dz, dff = 32, 64
    num_heads, num_layers = 2, 2
    din = dx + dy + 1

    key = jax.random.PRNGKey(0)
    kx1, kx2, ky1, ky2, kp = jax.random.split(key, 5)
    xc = jax.random.normal(kx1, (m, nc, dx), jnp.float32)
    yc = jax.random.normal(ky1, (m, nc, dy), jnp.float32)
    xt = jax.random.normal(kx2, (m, nt, dx), jnp.float32)
    yt = jax.random.normal(ky2, (m, nt, dy), jnp.float32)

    params = init_params(kp, din, dz, dff, num_layers)

    ref = jax.block_until_ready(ref_forward(params, xc, yc, xt, yt, num_heads))

    # Strict check: f32 MXU operands, exact softmax reciprocal.
    out_f32 = jax.block_until_ready(
        ar_inc_tnp_encoder_forward(params, xc, yc, xt, yt, num_heads,
                                   compute_dtype=jnp.float32))
    assert out_f32.shape == (m, nt, dz), out_f32.shape
    err_f32 = float(np.max(np.abs(np.asarray(out_f32) - np.asarray(ref))))
    assert np.allclose(np.asarray(out_f32), np.asarray(ref),
                       rtol=1e-3, atol=1e-3), err_f32

    # Performance path: bf16 MXU operands, f32 accumulation / LN / softmax.
    out_bf16 = jax.block_until_ready(
        ar_inc_tnp_encoder_forward(params, xc, yc, xt, yt, num_heads,
                                   compute_dtype=jnp.bfloat16))
    assert out_bf16.shape == (m, nt, dz), out_bf16.shape
    err_bf16 = float(np.max(np.abs(np.asarray(out_bf16) - np.asarray(ref))))
    assert np.allclose(np.asarray(out_bf16), np.asarray(ref),
                       rtol=3e-2, atol=3e-2), err_bf16

    print("KERNEL_OK")
</pallas_src>

<mosaic_0001>
module attributes {stable_mosaic.version = 11 : i64} {
  func.func @_fused_encoder_kernel(%arg0: i32, %arg1: i32, %arg2: memref<1x16x8xf32, #tpu.memory_space<vmem>>, %arg3: memref<8x32xf32, #tpu.memory_space<vmem>>, %arg4: memref<1x32xf32, #tpu.memory_space<vmem>>, %arg5: memref<32x32xf32, #tpu.memory_space<vmem>>, %arg6: memref<1x32xf32, #tpu.memory_space<vmem>>, %arg7: memref<1x32x96xf32, #tpu.memory_space<vmem>>, %arg8: memref<1x32x32xf32, #tpu.memory_space<vmem>>, %arg9: memref<1x32x64xf32, #tpu.memory_space<vmem>>, %arg10: memref<1x64x32xf32, #tpu.memory_space<vmem>>, %arg11: memref<1x8x96xf32, #tpu.memory_space<vmem>>, %arg12: memref<1x4x32xf32, #tpu.memory_space<vmem>>, %arg13: memref<16x32xf32, #tpu.memory_space<vmem>>, %arg14: memref<16x32xf32, #tpu.memory_space<vmem>>, %arg15: memref<16x16xf32, #tpu.memory_space<vmem>>) attributes {dimension_semantics = [#tpu.dimension_semantics<parallel>, #tpu.dimension_semantics<arbitrary>], iteration_bounds = array<i64: 2, 2>, scalar_prefetch = 0 : i64, scratch_operands = 3 : i64, tpu.core_type = #tpu.core_type<tc>, window_params = [{transform_indices = @transform_0, window_bounds = array<i64: 1, 16, 8>}, {pipeline_mode = #tpu.pipeline_mode<synchronous>, transform_indices = @transform_1, window_bounds = array<i64: 8, 32>}, {pipeline_mode = #tpu.pipeline_mode<synchronous>, transform_indices = @transform_2, window_bounds = array<i64: 1, 32>}, {pipeline_mode = #tpu.pipeline_mode<synchronous>, transform_indices = @transform_3, window_bounds = array<i64: 32, 32>}, {pipeline_mode = #tpu.pipeline_mode<synchronous>, transform_indices = @transform_4, window_bounds = array<i64: 1, 32>}, {transform_indices = @transform_5, window_bounds = array<i64: 1, 32, 96>}, {transform_indices = @transform_6, window_bounds = array<i64: 1, 32, 32>}, {transform_indices = @transform_7, window_bounds = array<i64: 1, 32, 64>}, {transform_indices = @transform_8, window_bounds = array<i64: 1, 64, 32>}, {transform_indices = @transform_9, window_bounds = array<i64: 1, 8, 96>}, {transform_indices = @transform_10, window_bounds = array<i64: 1, 4, 32>}]} {
    %c0_i32 = arith.constant 0 : i32
    %0 = arith.cmpi eq, %arg1, %c0_i32 : i32
    %1 = arith.extui %0 : i1 to i32
    %c0_i32_0 = arith.constant 0 : i32
    %2 = arith.cmpi ne, %1, %c0_i32_0 : i32
    scf.if %2 {
      %133 = tpu.iota {dimensions = array<i32: 0>} : vector<16x16xi32>
      %134 = tpu.iota {dimensions = array<i32: 1>} : vector<16x16xi32>
      %c8_i32 = arith.constant 8 : i32
      %135 = vector.broadcast %c8_i32 : i32 to vector<16x16xi32>
      %136 = arith.cmpi slt, %134, %135 : vector<16x16xi32>
      %c8_i32_50 = arith.constant 8 : i32
      %137 = vector.broadcast %c8_i32_50 : i32 to vector<16x16xi32>
      %138 = arith.cmpi sge, %134, %137 : vector<16x16xi32>
      %c12_i32 = arith.constant 12 : i32
      %139 = vector.broadcast %c12_i32 : i32 to vector<16x16xi32>
      %140 = arith.cmpi slt, %134, %139 : vector<16x16xi32>
      %141 = arith.andi %138, %140 : vector<16x16xi1>
      %c8_i32_51 = arith.constant 8 : i32
      %142 = vector.broadcast %c8_i32_51 : i32 to vector<16x16xi32>
      %143 = arith.cmpi sge, %133, %142 : vector<16x16xi32>
      %144 = arith.cmpi sle, %134, %133 : vector<16x16xi32>
      %145 = arith.ori %143, %144 : vector<16x16xi1>
      %146 = arith.andi %136, %145 : vector<16x16xi1>
      %c8_i32_52 = arith.constant 8 : i32
      %147 = vector.broadcast %c8_i32_52 : i32 to vector<16x16xi32>
      %148 = arith.cmpi sge, %133, %147 : vector<16x16xi32>
      %c12_i32_53 = arith.constant 12 : i32
      %149 = vector.broadcast %c12_i32_53 : i32 to vector<16x16xi32>
      %150 = arith.cmpi slt, %133, %149 : vector<16x16xi32>
      %151 = arith.andi %148, %150 : vector<16x16xi1>
      %152 = arith.cmpi sle, %134, %133 : vector<16x16xi32>
      %153 = arith.andi %151, %152 : vector<16x16xi1>
      %c12_i32_54 = arith.constant 12 : i32
      %154 = vector.broadcast %c12_i32_54 : i32 to vector<16x16xi32>
      %155 = arith.cmpi sge, %133, %154 : vector<16x16xi32>
      %c4_i32 = arith.constant 4 : i32
      %156 = vector.broadcast %c4_i32 : i32 to vector<16x16xi32>
      %157 = arith.subi %133, %156 : vector<16x16xi32>
      %158 = arith.cmpi slt, %134, %157 : vector<16x16xi32>
      %159 = arith.andi %155, %158 : vector<16x16xi1>
      %160 = arith.ori %153, %159 : vector<16x16xi1>
      %161 = arith.andi %141, %160 : vector<16x16xi1>
      %162 = arith.ori %146, %161 : vector<16x16xi1>
      %cst_55 = arith.constant 0.000000e+00 : f32
      %cst_56 = arith.constant -1.000000e+30 : f32
      %163 = vector.broadcast %cst_55 : f32 to vector<16x16xf32>
      %164 = vector.broadcast %cst_56 : f32 to vector<16x16xf32>
      %165 = arith.select %162, %163, %164 : vector<16x16xi1>, vector<16x16xf32>
      %c0_57 = arith.constant 0 : index
      %c0_58 = arith.constant 0 : index
      %166 = vector.load %arg15[%c0_57, %c0_58] : memref<16x16xf32, #tpu.memory_space<vmem>>, vector<16x16xf32>
      tpu.vector_store %arg15[%c0_57, %c0_58], %165 {strides = array<i32>} : memref<16x16xf32, #tpu.memory_space<vmem>>, vector<16x16xf32>,
      %c0_59 = arith.constant 0 : index
      %c0_60 = arith.constant 0 : index
      %c0_61 = arith.constant 0 : index
      %167 = vector.load %arg2[%c0_59, %c0_60, %c0_61] : memref<1x16x8xf32, #tpu.memory_space<vmem>>, vector<1x16x8xf32>
      %168 = vector.shape_cast %167 : vector<1x16x8xf32> to vector<16x8xf32>
      %c0_62 = arith.constant 0 : index
      %c0_63 = arith.constant 0 : index
      %169 = vector.load %arg3[%c0_62, %c0_63] : memref<8x32xf32, #tpu.memory_space<vmem>>, vector<8x32xf32>
      %cst_64 = arith.constant dense<0.000000e+00> : vector<16x32xf32>
      %170 = tpu.matmul %168, %169, %cst_64 {dimension_numbers = #tpu.dot_dimension_numbers<[1], [0], [0], [1], [0, 0, 1, 1], [], []>} : vector<16x8xf32>, vector<8x32xf32>, vector<16x32xf32> -> vector<16x32xf32>
      %c0_65 = arith.constant 0 : index
      %c0_66 = arith.constant 0 : index
      %171 = vector.load %arg4[%c0_65, %c0_66] : memref<1x32xf32, #tpu.memory_space<vmem>>, vector<1x32xf32>
      %172 = vector.broadcast %171 : vector<1x32xf32> to vector<16x32xf32>
      %173 = arith.addf %170, %172 : vector<16x32xf32>
      %cst_67 = arith.constant 0.000000e+00 : f32
      %174 = vector.broadcast %cst_67 : f32 to vector<16x32xf32>
      %175 = arith.maximumf %173, %174 : vector<16x32xf32>
      %c0_68 = arith.constant 0 : index
      %c0_69 = arith.constant 0 : index
      %176 = vector.load %arg5[%c0_68, %c0_69] : memref<32x32xf32, #tpu.memory_space<vmem>>, vector<32x32xf32>
      %cst_70 = arith.constant dense<0.000000e+00> : vector<16x32xf32>
      %177 = tpu.matmul %175, %176, %cst_70 {dimension_numbers = #tpu.dot_dimension_numbers<[1], [0], [0], [1], [0, 0, 1, 1], [], []>} : vector<16x32xf32>, vector<32x32xf32>, vector<16x32xf32> -> vector<16x32xf32>
      %c0_71 = arith.constant 0 : index
      %c0_72 = arith.constant 0 : index
      %178 = vector.load %arg6[%c0_71, %c0_72] : memref<1x32xf32, #tpu.memory_space<vmem>>, vector<1x32xf32>
      %179 = vector.broadcast %178 : vector<1x32xf32> to vector<16x32xf32>
      %180 = arith.addf %177, %179 : vector<16x32xf32>
      %c0_73 = arith.constant 0 : index
      %c0_74 = arith.constant 0 : index
      %181 = vector.load %arg13[%c0_73, %c0_74] : memref<16x32xf32, #tpu.memory_space<vmem>>, vector<16x32xf32>
      tpu.vector_store %arg13[%c0_73, %c0_74], %180 {strides = array<i32>} : memref<16x32xf32, #tpu.memory_space<vmem>>, vector<16x32xf32>,
    } else {
    }
    %c0 = arith.constant 0 : index
    %c0_1 = arith.constant 0 : index
    %3 = vector.load %arg13[%c0, %c0_1] : memref<16x32xf32, #tpu.memory_space<vmem>>, vector<16x32xf32>
    %c0_2 = arith.constant 0 : index
    %c0_3 = arith.constant 0 : index
    %c0_4 = arith.constant 0 : index
    %4 = vector.load %arg11[%c0_2, %c0_3, %c0_4] : memref<1x8x96xf32, #tpu.memory_space<vmem>>, vector<1x8x96xf32>
    %5 = vector.shape_cast %4 : vector<1x8x96xf32> to vector<8x96xf32>
    %6 = vector.extract_strided_slice %5 {offsets = [0, 0], sizes = [1, 32], strides = [1, 1]} : vector<8x96xf32> to vector<1x32xf32>
    %7 = vector.extract_strided_slice %5 {offsets = [1, 0], sizes = [1, 32], strides = [1, 1]} : vector<8x96xf32> to vector<1x32xf32>
    %8 = vector.extract_strided_slice %5 {offsets = [2, 0], sizes = [1, 32], strides = [1, 1]} : vector<8x96xf32> to vector<1x32xf32>
    %9 = vector.extract_strided_slice %5 {offsets = [3, 0], sizes = [1, 32], strides = [1, 1]} : vector<8x96xf32> to vector<1x32xf32>
    %10 = vector.extract_strided_slice %5 {offsets = [4, 0], sizes = [1, 32], strides = [1, 1]} : vector<8x96xf32> to vector<1x32xf32>
    %11 = vector.extract_strided_slice %5 {offsets = [5, 0], sizes = [1, 32], strides = [1, 1]} : vector<8x96xf32> to vector<1x32xf32>
    %12 = vector.extract_strided_slice %5 {offsets = [6, 0], sizes = [1, 96], strides = [1, 1]} : vector<8x96xf32> to vector<1x96xf32>
    %13 = vector.extract_strided_slice %5 {offsets = [7, 0], sizes = [1, 64], strides = [1, 1]} : vector<8x96xf32> to vector<1x64xf32>
    %cst = arith.constant dense<0.000000e+00> : vector<16xf32>
    %14 = vector.multi_reduction <add>, %3, %cst [1] : vector<16x32xf32> to vector<16xf32>
    %15 = vector.shape_cast %14 : vector<16xf32> to vector<16x1xf32>
    %cst_5 = arith.constant 3.200000e+01 : f32
    %16 = vector.broadcast %cst_5 : f32 to vector<16x1xf32>
    %17 = arith.divf %15, %16 : vector<16x1xf32>
    %18 = vector.broadcast %17 : vector<16x1xf32> to vector<16x32xf32>
    %19 = arith.subf %3, %18 : vector<16x32xf32>
    %20 = arith.mulf %19, %19 : vector<16x32xf32>
    %cst_6 = arith.constant dense<0.000000e+00> : vector<16xf32>
    %21 = vector.multi_reduction <add>, %20, %cst_6 [1] : vector<16x32xf32> to vector<16xf32>
    %22 = vector.shape_cast %21 : vector<16xf32> to vector<16x1xf32>
    %cst_7 = arith.constant 3.200000e+01 : f32
    %23 = vector.broadcast %cst_7 : f32 to vector<16x1xf32>
    %24 = arith.divf %22, %23 : vector<16x1xf32>
    %25 = vector.broadcast %17 : vector<16x1xf32> to vector<16x32xf32>
    %26 = arith.subf %3, %25 : vector<16x32xf32>
    %cst_8 = arith.constant 9.99999974E-6 : f32
    %27 = vector.broadcast %cst_8 : f32 to vector<16x1xf32>
    %28 = arith.addf %24, %27 : vector<16x1xf32>
    %29 = math.rsqrt %28 : vector<16x1xf32>
    %30 = vector.broadcast %29 : vector<16x1xf32> to vector<16x32xf32>
    %31 = arith.mulf %26, %30 : vector<16x32xf32>
    %32 = vector.broadcast %6 : vector<1x32xf32> to vector<16x32xf32>
    %33 = arith.mulf %31, %32 : vector<16x32xf32>
    %34 = vector.broadcast %7 : vector<1x32xf32> to vector<16x32xf32>
    %35 = arith.addf %33, %34 : vector<16x32xf32>
    %c0_9 = arith.constant 0 : index
    %c0_10 = arith.constant 0 : index
    %c0_11 = arith.constant 0 : index
    %36 = vector.load %arg7[%c0_9, %c0_10, %c0_11] : memref<1x32x96xf32, #tpu.memory_space<vmem>>, vector<1x32x96xf32>
    %37 = vector.shape_cast %36 : vector<1x32x96xf32> to vector<32x96xf32>
    %cst_12 = arith.constant dense<0.000000e+00> : vector<16x96xf32>
    %38 = tpu.matmul %35, %37, %cst_12 {dimension_numbers = #tpu.dot_dimension_numbers<[1], [0], [0], [1], [0, 0, 1, 1], [], []>} : vector<16x32xf32>, vector<32x96xf32>, vector<16x96xf32> -> vector<16x96xf32>
    %39 = vector.broadcast %12 : vector<1x96xf32> to vector<16x96xf32>
    %40 = arith.addf %38, %39 : vector<16x96xf32>
    %41 = vector.extract_strided_slice %40 {offsets = [0, 0], sizes = [16, 32], strides = [1, 1]} : vector<16x96xf32> to vector<16x32xf32>
    %cst_13 = arith.constant 2.500000e-01 : f32
    %42 = vector.broadcast %cst_13 : f32 to vector<16x32xf32>
    %43 = arith.mulf %41, %42 : vector<16x32xf32>
    %44 = vector.shape_cast %43 : vector<16x32xf32> to vector<1x16x32xf32>
    %45 = vector.extract_strided_slice %40 {offsets = [0, 32], sizes = [16, 32], strides = [1, 1]} : vector<16x96xf32> to vector<16x32xf32>
    %46 = vector.shape_cast %45 : vector<16x32xf32> to vector<1x16x32xf32>
    %47 = vector.extract_strided_slice %40 {offsets = [0, 64], sizes = [16, 32], strides = [1, 1]} : vector<16x96xf32> to vector<16x32xf32>
    %48 = vector.shape_cast %47 : vector<16x32xf32> to vector<1x16x32xf32>
    %c0_14 = arith.constant 0 : index
    %c0_15 = arith.constant 0 : index
    %49 = vector.load %arg15[%c0_14, %c0_15] : memref<16x16xf32, #tpu.memory_space<vmem>>, vector<16x16xf32>
    %50 = vector.shape_cast %49 : vector<16x16xf32> to vector<1x16x16xf32>
    %51 = vector.extract_strided_slice %44 {offsets = [0, 0, 0], sizes = [1, 16, 16], strides = [1, 1, 1]} : vector<1x16x32xf32> to vector<1x16x16xf32>
    %52 = vector.extract_strided_slice %46 {offsets = [0, 0, 0], sizes = [1, 16, 16], strides = [1, 1, 1]} : vector<1x16x32xf32> to vector<1x16x16xf32>
    %53 = vector.extract_strided_slice %48 {offsets = [0, 0, 0], sizes = [1, 16, 16], strides = [1, 1, 1]} : vector<1x16x32xf32> to vector<1x16x16xf32>
    "tpu.trace_start"() <{level = 10 : i32, message = "bqd,bkd->bqk"}> : () -> ()
    %cst_16 = arith.constant dense<0.000000e+00> : vector<1x16x16xf32>
    %54 = tpu.matmul %51, %52, %cst_16 {dimension_numbers = #tpu.dot_dimension_numbers<[2], [2], [1], [1], [0, 0, 0, 1, 1, 1], [0], [0]>} : vector<1x16x16xf32>, vector<1x16x16xf32>, vector<1x16x16xf32> -> vector<1x16x16xf32>
    "tpu.trace_stop"() : () -> ()
    %55 = arith.addf %54, %50 : vector<1x16x16xf32>
    %cst_17 = arith.constant dense<0xFF800000> : vector<1x16xf32>
    %56 = vector.multi_reduction <maximumf>, %55, %cst_17 [2] : vector<1x16x16xf32> to vector<1x16xf32>
    %57 = vector.shape_cast %56 : vector<1x16xf32> to vector<1x16x1xf32>
    %58 = vector.broadcast %57 : vector<1x16x1xf32> to vector<1x16x16xf32>
    %59 = arith.subf %55, %58 : vector<1x16x16xf32>
    %60 = math.exp %59 : vector<1x16x16xf32>
    %cst_18 = arith.constant dense<0.000000e+00> : vector<1x16xf32>
    %61 = vector.multi_reduction <add>, %60, %cst_18 [2] : vector<1x16x16xf32> to vector<1x16xf32>
    %62 = vector.shape_cast %61 : vector<1x16xf32> to vector<1x16x1xf32>
    %63 = tpu.reciprocal %62 : vector<1x16x1xf32> -> vector<1x16x1xf32>
    %64 = vector.broadcast %63 : vector<1x16x1xf32> to vector<1x16x16xf32>
    %65 = arith.mulf %60, %64 : vector<1x16x16xf32>
    "tpu.trace_start"() <{level = 10 : i32, message = "bqk,bkd->bqd"}> : () -> ()
    %cst_19 = arith.constant dense<0.000000e+00> : vector<1x16x16xf32>
    %66 = tpu.matmul %65, %53, %cst_19 {dimension_numbers = #tpu.dot_dimension_numbers<[2], [1], [1], [2], [0, 0, 0, 1, 1, 2], [0], [0]>} : vector<1x16x16xf32>, vector<1x16x16xf32>, vector<1x16x16xf32> -> vector<1x16x16xf32>
    "tpu.trace_stop"() : () -> ()
    %67 = vector.shape_cast %66 : vector<1x16x16xf32> to vector<16x16xf32>
    %c0_20 = arith.constant 0 : index
    %c0_21 = arith.constant 0 : index
    %68 = vector.load %arg14[%c0_20, %c0_21] : memref<16x32xf32, #tpu.memory_space<vmem>>, vector<16x16xf32>
    tpu.vector_store %arg14[%c0_20, %c0_21], %67 {strides = array<i32>} : memref<16x32xf32, #tpu.memory_space<vmem>>, vector<16x16xf32>,
    %69 = vector.extract_strided_slice %44 {offsets = [0, 0, 16], sizes = [1, 16, 16], strides = [1, 1, 1]} : vector<1x16x32xf32> to vector<1x16x16xf32>
    %70 = vector.extract_strided_slice %46 {offsets = [0, 0, 16], sizes = [1, 16, 16], strides = [1, 1, 1]} : vector<1x16x32xf32> to vector<1x16x16xf32>
    %71 = vector.extract_strided_slice %48 {offsets = [0, 0, 16], sizes = [1, 16, 16], strides = [1, 1, 1]} : vector<1x16x32xf32> to vector<1x16x16xf32>
    "tpu.trace_start"() <{level = 10 : i32, message = "bqd,bkd->bqk"}> : () -> ()
    %cst_22 = arith.constant dense<0.000000e+00> : vector<1x16x16xf32>
    %72 = tpu.matmul %69, %70, %cst_22 {dimension_numbers = #tpu.dot_dimension_numbers<[2], [2], [1], [1], [0, 0, 0, 1, 1, 1], [0], [0]>} : vector<1x16x16xf32>, vector<1x16x16xf32>, vector<1x16x16xf32> -> vector<1x16x16xf32>
    "tpu.trace_stop"() : () -> ()
    %73 = arith.addf %72, %50 : vector<1x16x16xf32>
    %cst_23 = arith.constant dense<0xFF800000> : vector<1x16xf32>
    %74 = vector.multi_reduction <maximumf>, %73, %cst_23 [2] : vector<1x16x16xf32> to vector<1x16xf32>
    %75 = vector.shape_cast %74 : vector<1x16xf32> to vector<1x16x1xf32>
    %76 = vector.broadcast %75 : vector<1x16x1xf32> to vector<1x16x16xf32>
    %77 = arith.subf %73, %76 : vector<1x16x16xf32>
    %78 = math.exp %77 : vector<1x16x16xf32>
    %cst_24 = arith.constant dense<0.000000e+00> : vector<1x16xf32>
    %79 = vector.multi_reduction <add>, %78, %cst_24 [2] : vector<1x16x16xf32> to vector<1x16xf32>
    %80 = vector.shape_cast %79 : vector<1x16xf32> to vector<1x16x1xf32>
    %81 = tpu.reciprocal %80 : vector<1x16x1xf32> -> vector<1x16x1xf32>
    %82 = vector.broadcast %81 : vector<1x16x1xf32> to vector<1x16x16xf32>
    %83 = arith.mulf %78, %82 : vector<1x16x16xf32>
    "tpu.trace_start"() <{level = 10 : i32, message = "bqk,bkd->bqd"}> : () -> ()
    %cst_25 = arith.constant dense<0.000000e+00> : vector<1x16x16xf32>
    %84 = tpu.matmul %83, %71, %cst_25 {dimension_numbers = #tpu.dot_dimension_numbers<[2], [1], [1], [2], [0, 0, 0, 1, 1, 2], [0], [0]>} : vector<1x16x16xf32>, vector<1x16x16xf32>, vector<1x16x16xf32> -> vector<1x16x16xf32>
    "tpu.trace_stop"() : () -> ()
    %85 = vector.shape_cast %84 : vector<1x16x16xf32> to vector<16x16xf32>
    %c0_26 = arith.constant 0 : index
    %c16 = arith.constant 16 : index
    %86 = vector.load %arg14[%c0_26, %c16] : memref<16x32xf32, #tpu.memory_space<vmem>>, vector<16x16xf32>
    tpu.vector_store %arg14[%c0_26, %c16], %85 {strides = array<i32>} : memref<16x32xf32, #tpu.memory_space<vmem>>, vector<16x16xf32>,
    %c0_27 = arith.constant 0 : index
    %c0_28 = arith.constant 0 : index
    %87 = vector.load %arg14[%c0_27, %c0_28] : memref<16x32xf32, #tpu.memory_space<vmem>>, vector<16x32xf32>
    %c0_29 = arith.constant 0 : index
    %c0_30 = arith.constant 0 : index
    %c0_31 = arith.constant 0 : index
    %88 = vector.load %arg8[%c0_29, %c0_30, %c0_31] : memref<1x32x32xf32, #tpu.memory_space<vmem>>, vector<1x32x32xf32>
    %89 = vector.shape_cast %88 : vector<1x32x32xf32> to vector<32x32xf32>
    %cst_32 = arith.constant dense<0.000000e+00> : vector<16x32xf32>
    %90 = tpu.matmul %87, %89, %cst_32 {dimension_numbers = #tpu.dot_dimension_numbers<[1], [0], [0], [1], [0, 0, 1, 1], [], []>} : vector<16x32xf32>, vector<32x32xf32>, vector<16x32xf32> -> vector<16x32xf32>
    %91 = arith.addf %3, %90 : vector<16x32xf32>
    %92 = vector.broadcast %8 : vector<1x32xf32> to vector<16x32xf32>
    %93 = arith.addf %91, %92 : vector<16x32xf32>
    %cst_33 = arith.constant dense<0.000000e+00> : vector<16xf32>
    %94 = vector.multi_reduction <add>, %93, %cst_33 [1] : vector<16x32xf32> to vector<16xf32>
    %95 = vector.shape_cast %94 : vector<16xf32> to vector<16x1xf32>
    %cst_34 = arith.constant 3.200000e+01 : f32
    %96 = vector.broadcast %cst_34 : f32 to vector<16x1xf32>
    %97 = arith.divf %95, %96 : vector<16x1xf32>
    %98 = vector.broadcast %97 : vector<16x1xf32> to vector<16x32xf32>
    %99 = arith.subf %93, %98 : vector<16x32xf32>
    %100 = arith.mulf %99, %99 : vector<16x32xf32>
    %cst_35 = arith.constant dense<0.000000e+00> : vector<16xf32>
    %101 = vector.multi_reduction <add>, %100, %cst_35 [1] : vector<16x32xf32> to vector<16xf32>
    %102 = vector.shape_cast %101 : vector<16xf32> to vector<16x1xf32>
    %cst_36 = arith.constant 3.200000e+01 : f32
    %103 = vector.broadcast %cst_36 : f32 to vector<16x1xf32>
    %104 = arith.divf %102, %103 : vector<16x1xf32>
    %105 = vector.broadcast %97 : vector<16x1xf32> to vector<16x32xf32>
    %106 = arith.subf %93, %105 : vector<16x32xf32>
    %cst_37 = arith.constant 9.99999974E-6 : f32
    %107 = vector.broadcast %cst_37 : f32 to vector<16x1xf32>
    %108 = arith.addf %104, %107 : vector<16x1xf32>
    %109 = math.rsqrt %108 : vector<16x1xf32>
    %110 = vector.broadcast %109 : vector<16x1xf32> to vector<16x32xf32>
    %111 = arith.mulf %106, %110 : vector<16x32xf32>
    %112 = vector.broadcast %9 : vector<1x32xf32> to vector<16x32xf32>
    %113 = arith.mulf %111, %112 : vector<16x32xf32>
    %114 = vector.broadcast %10 : vector<1x32xf32> to vector<16x32xf32>
    %115 = arith.addf %113, %114 : vector<16x32xf32>
    %c0_38 = arith.constant 0 : index
    %c0_39 = arith.constant 0 : index
    %c0_40 = arith.constant 0 : index
    %116 = vector.load %arg9[%c0_38, %c0_39, %c0_40] : memref<1x32x64xf32, #tpu.memory_space<vmem>>, vector<1x32x64xf32>
    %117 = vector.shape_cast %116 : vector<1x32x64xf32> to vector<32x64xf32>
    %cst_41 = arith.constant dense<0.000000e+00> : vector<16x64xf32>
    %118 = tpu.matmul %115, %117, %cst_41 {dimension_numbers = #tpu.dot_dimension_numbers<[1], [0], [0], [1], [0, 0, 1, 1], [], []>} : vector<16x32xf32>, vector<32x64xf32>, vector<16x64xf32> -> vector<16x64xf32>
    %119 = vector.broadcast %13 : vector<1x64xf32> to vector<16x64xf32>
    %120 = arith.addf %118, %119 : vector<16x64xf32>
    %cst_42 = arith.constant 0.000000e+00 : f32
    %121 = vector.broadcast %cst_42 : f32 to vector<16x64xf32>
    %122 = arith.maximumf %120, %121 : vector<16x64xf32>
    %c0_43 = arith.constant 0 : index
    %c0_44 = arith.constant 0 : index
    %c0_45 = arith.constant 0 : index
    %123 = vector.load %arg10[%c0_43, %c0_44, %c0_45] : memref<1x64x32xf32, #tpu.memory_space<vmem>>, vector<1x64x32xf32>
    %124 = vector.shape_cast %123 : vector<1x64x32xf32> to vector<64x32xf32>
    %cst_46 = arith.constant dense<0.000000e+00> : vector<16x32xf32>
    %125 = tpu.matmul %122, %124, %cst_46 {dimension_numbers = #tpu.dot_dimension_numbers<[1], [0], [0], [1], [0, 0, 1, 1], [], []>} : vector<16x64xf32>, vector<64x32xf32>, vector<16x32xf32> -> vector<16x32xf32>
    %126 = arith.addf %93, %125 : vector<16x32xf32>
    %127 = vector.broadcast %11 : vector<1x32xf32> to vector<16x32xf32>
    %128 = arith.addf %126, %127 : vector<16x32xf32>
    %c0_47 = arith.constant 0 : index
    %c0_48 = arith.constant 0 : index
    %129 = vector.load %arg13[%c0_47, %c0_48] : memref<16x32xf32, #tpu.memory_space<vmem>>, vector<16x32xf32>
    tpu.vector_store %arg13[%c0_47, %c0_48], %128 {strides = array<i32>} : memref<16x32xf32, #tpu.memory_space<vmem>>, vector<16x32xf32>,
    %c1_i32 = arith.constant 1 : i32
    %130 = arith.cmpi eq, %arg1, %c1_i32 : i32
    %131 = arith.extui %130 : i1 to i32
    %c0_i32_49 = arith.constant 0 : i32
    %132 = arith.cmpi ne, %131, %c0_i32_49 : i32
    scf.if %132 {
      %133 = vector.shape_cast %128 : vector<16x32xf32> to vector<1x16x32xf32>
      %134 = vector.extract_strided_slice %133 {offsets = [0, 12, 0], sizes = [1, 4, 32], strides = [1, 1, 1]} : vector<1x16x32xf32> to vector<1x4x32xf32>
      %c0_50 = arith.constant 0 : index
      %c0_51 = arith.constant 0 : index
      %c0_52 = arith.constant 0 : index
      %135 = vector.load %arg12[%c0_50, %c0_51, %c0_52] : memref<1x4x32xf32, #tpu.memory_space<vmem>>, vector<1x4x32xf32>
      tpu.vector_store %arg12[%c0_50, %c0_51, %c0_52], %134 {strides = array<i32>} : memref<1x4x32xf32, #tpu.memory_space<vmem>>, vector<1x4x32xf32>,
    } else {
    }
    return
  }
  func.func @transform_0(%arg0: i32, %arg1: i32) -> (i32, i32, i32) {
    %c0_i32 = arith.constant 0 : i32
    %c0_i32_0 = arith.constant 0 : i32
    %c0_i32_1 = arith.constant 0 : i32
    return %arg0, %c0_i32, %c0_i32_0 : i32, i32, i32
  }
  func.func @transform_1(%arg0: i32, %arg1: i32) -> (i32, i32) {
    %c0_i32 = arith.constant 0 : i32
    %c0_i32_0 = arith.constant 0 : i32
    %c0_i32_1 = arith.constant 0 : i32
    return %c0_i32, %c0_i32_0 : i32, i32
  }
  func.func @transform_2(%arg0: i32, %arg1: i32) -> (i32, i32) {
    %c0_i32 = arith.constant 0 : i32
    %c0_i32_0 = arith.constant 0 : i32
    %c0_i32_1 = arith.constant 0 : i32
    return %c0_i32, %c0_i32_0 : i32, i32
  }
  func.func @transform_3(%arg0: i32, %arg1: i32) -> (i32, i32) {
    %c0_i32 = arith.constant 0 : i32
    %c0_i32_0 = arith.constant 0 : i32
    %c0_i32_1 = arith.constant 0 : i32
    return %c0_i32, %c0_i32_0 : i32, i32
  }
  func.func @transform_4(%arg0: i32, %arg1: i32) -> (i32, i32) {
    %c0_i32 = arith.constant 0 : i32
    %c0_i32_0 = arith.constant 0 : i32
    %c0_i32_1 = arith.constant 0 : i32
    return %c0_i32, %c0_i32_0 : i32, i32
  }
  func.func @transform_5(%arg0: i32, %arg1: i32) -> (i32, i32, i32) {
    %c0_i32 = arith.constant 0 : i32
    %c0_i32_0 = arith.constant 0 : i32
    %c0_i32_1 = arith.constant 0 : i32
    return %arg1, %c0_i32, %c0_i32_0 : i32, i32, i32
  }
  func.func @transform_6(%arg0: i32, %arg1: i32) -> (i32, i32, i32) {
    %c0_i32 = arith.constant 0 : i32
    %c0_i32_0 = arith.constant 0 : i32
    %c0_i32_1 = arith.constant 0 : i32
    return %arg1, %c0_i32, %c0_i32_0 : i32, i32, i32
  }
  func.func @transform_7(%arg0: i32, %arg1: i32) -> (i32, i32, i32) {
    %c0_i32 = arith.constant 0 : i32
    %c0_i32_0 = arith.constant 0 : i32
    %c0_i32_1 = arith.constant 0 : i32
    return %arg1, %c0_i32, %c0_i32_0 : i32, i32, i32
  }
  func.func @transform_8(%arg0: i32, %arg1: i32) -> (i32, i32, i32) {
    %c0_i32 = arith.constant 0 : i32
    %c0_i32_0 = arith.constant 0 : i32
    %c0_i32_1 = arith.constant 0 : i32
    return %arg1, %c0_i32, %c0_i32_0 : i32, i32, i32
  }
  func.func @transform_9(%arg0: i32, %arg1: i32) -> (i32, i32, i32) {
    %c0_i32 = arith.constant 0 : i32
    %c0_i32_0 = arith.constant 0 : i32
    %c0_i32_1 = arith.constant 0 : i32
    return %arg1, %c0_i32, %c0_i32_0 : i32, i32, i32
  }
  func.func @transform_10(%arg0: i32, %arg1: i32) -> (i32, i32, i32) {
    %c0_i32 = arith.constant 0 : i32
    %c0_i32_0 = arith.constant 0 : i32
    %c0_i32_1 = arith.constant 0 : i32
    return %arg0, %c0_i32, %c0_i32_0 : i32, i32, i32
  }
}

</mosaic_0001>

<llo_original>
// kernel: tpu_custom_call.1
$region0: #{tpu_custom_call.1}
  #allocation0 [shape = 'u32[]', space=smem, size = 0x4, offset = 0x4, fixed_abs, tag = 'smem constant byte address 0x4 - core index']
  #allocation1 [shape = 'u32[72,128]{1,0:T(1,128)}', space=vmem, size = 0x9000, scoped, tag = 'internal scratch']
  #allocation2 [shape = 'f32[16,32]{1,0:T(8,128)}', space=vmem, size = 0x2000, scoped, tag = 'scratch operand']
  #allocation3 [shape = 'f32[16,32]{1,0:T(8,128)}', space=vmem, size = 0x2000, scoped, tag = 'scratch operand']
  #allocation4 [shape = 'f32[16,16]{1,0:T(8,128)}', space=vmem, size = 0x2000, scoped, tag = 'scratch operand']
  %s0 = inlined_call_operand.vmem [shape: f32[2,16,8], index: 0, kind: input, shape index: {}]
  %s1 = inlined_call_operand.hbm [shape: f32[8,32], index: 1, kind: input, shape index: {}]
  %s2 = inlined_call_operand.hbm [shape: f32[1,32], index: 2, kind: input, shape index: {}]
  %s3 = inlined_call_operand.vmem [shape: f32[32,32], index: 3, kind: input, shape index: {}]
  %s4 = inlined_call_operand.vmem [shape: f32[1,32], index: 4, kind: input, shape index: {}]
  %s5 = inlined_call_operand.vmem [shape: f32[2,32,96], index: 5, kind: input, shape index: {}]
  %s6 = inlined_call_operand.vmem [shape: f32[2,32,32], index: 6, kind: input, shape index: {}]
  %s7 = inlined_call_operand.vmem [shape: f32[2,32,64], index: 7, kind: input, shape index: {}]
  %s8 = inlined_call_operand.vmem [shape: f32[2,64,32], index: 8, kind: input, shape index: {}]
  %s9 = inlined_call_operand.vmem [shape: f32[2,8,96], index: 9, kind: input, shape index: {}]
  %s10 = inlined_call_operand.hbm [shape: f32[2,4,32], index: 10, kind: output, shape index: {}]
  %s11 = sld [smem:[#allocation0]]
  $region89: #{tpu_custom_call.1} parent=0
    _
  %s13 = ssub.s32 1, %s11
  %s14 = scalar_select 0, %s13, %s11
  $region1: #{tpu_custom_call.1} parent=0
    #allocation5 [shape = 'u8[4096]{0}', space=vmem, size = 0x1000, scoped, tag = 'input window, operand 1, single buffered']
    #allocation6 [shape = 's32[2]{0}', space=sflag, size = 0x8, scoped, tag = 'scoped memory for tpu_custom_call.1']
    #allocation7 [shape = 's32[2]{0}', space=sflag, size = 0x8, scoped, tag = 'scoped memory for tpu_custom_call.1']
    #allocation8 [shape = 'u8[512]{0}', space=vmem, size = 0x400, scoped, tag = 'input window, operand 2, single buffered']
    #allocation9 [shape = 's32[1]{0}', space=sflag, size = 0x4, scoped, tag = 'scoped memory for tpu_custom_call.1']
    #allocation10 [shape = 'u8[4096]{0}', space=vmem, size = 0x1000, scoped, tag = 'output window, operand 0']
    %15 = vsyncpa [#allocation6], 0
    %16 = vsyncpa [#allocation9], 0
    %17 = vsyncpa [#allocation7], 0
    %s18 = scalar_lea.sflag [#allocation7], 1
    %19 = vsyncpa %s18, 0
    loop: start=0, step=1, limit=6
    $region2: #{tpu_custom_call.1} parent=1 // loop_pre_header
      _
    $region3: #{tpu_custom_call.1} parent=1 // loop_header
      %s21 = sphi 0, %s25
      %p22 = scmp.ge.s32.totalorder %s21, 6
      %s28 = sphi 0, %s40
      %s29 = sphi 0, %s36
      %s30 = sphi 0, %s28
      %s31 = sphi 0, %s29
      %s32 = sphi 0, %s30
      %s33 = sphi 0, %s31
      %s43 = sphi 0, %s45
      %s46 = sphi 0, %s43
      %s47 = sphi 0, %s46
      %s63 = sphi 0, %s47
      %s67 = sphi 0, %s67
      %s69 = sphi 0, %s67
      %s70 = sphi 0, %s69
      %s84 = sphi 0, %s70
      %s88 = sphi 0, %s88
      %s90 = sphi 0, %s88
      %s91 = sphi 0, %s90
      %s105 = sphi 0, %s91
      %s109 = sphi 0, %s109
      %s111 = sphi 0, %s109
      %s112 = sphi 0, %s111
      %s126 = sphi 0, %s112
      %s130 = sphi 0, %s130
      %s132 = sphi 0, %s130
      %s133 = sphi 0, %s132
      %s147 = sphi 0, %s133
      %s153 = sphi 0, %s155
      %s156 = sphi 0, %s153
      %s157 = sphi 0, %s156
      %s173 = sphi 0, %s157
      %s179 = sphi 0, %s181
      %s182 = sphi 0, %s179
      %s183 = sphi 0, %s182
      %s199 = sphi 0, %s183
      %s205 = sphi 0, %s207
      %s208 = sphi 0, %s205
      %s209 = sphi 0, %s208
      %s225 = sphi 0, %s209
      %s231 = sphi 0, %s233
      %s234 = sphi 0, %s231
      %s235 = sphi 0, %s234
      %s251 = sphi 0, %s235
      %s257 = sphi 0, %s259
      %s260 = sphi 0, %s257
      %s261 = sphi 0, %s260
      %s277 = sphi 0, %s261
      %s283 = sphi 0, %s285
      %s286 = sphi 0, %s283
      %s287 = sphi 0, %s286
      %s303 = sphi 0, %s287
    $region4: #{tpu_custom_call.1} parent=1 // loop_header_branch
      %24 = sbr.rel (%p22) target = $region8
    $region5: #{tpu_custom_call.1} parent=1 // loop_body
      %s26 = ssub.s32 %s21, 1
      %s27 = ssub.s32 %s21, 2
      %s34 = sadd.s32 1, %s29
      %p35 = scmp.ge.s32.totalorder %s34, 2
      %s36 = scalar_select %p35, 0, %s34
      %s37 = sadd.s32 1, %s28
      %s38 = scalar_select %p35, %s37, %s28
      %p39 = scmp.ge.s32.totalorder %s38, 2
      %s40 = scalar_select %p39, 0, %s38
      %s41 = ssub.s32 %s28, %s40
      %p42 = scmp.eq.s32.totalorder %s41, 0
      %s44 = sadd.s32 %s43, 1
      %s45 = scalar_select %p42, %s43, %s44
      %p48 = pneg %p42
      %p49 = scmp.eq.s32.totalorder %s21, 3
      %p50 = por %p48, %p49
      %p51 = scmp.ne.s32.totalorder %s43, %s46
      %p52 = scmp.eq.s32.totalorder %s21, 0
      %p53 = por %p51, %p52
      %p54 = scmp.ne.s32.totalorder %s43, %s46
      %p55 = scmp.eq.s32.totalorder %s26, 3
      %p56 = por %p54, %p55
      %p57 = scmp.ne.s32.totalorder %s46, %s47
      %p58 = scmp.eq.s32.totalorder %s26, 0
      %p59 = por %p57, %p58
      %p60 = scmp.ne.s32.totalorder %s46, %s47
      %p61 = scmp.eq.s32.totalorder %s27, 3
      %p62 = por %p60, %p61
      %p64 = scmp.ne.s32.totalorder %s47, %s63
      %p65 = scmp.eq.s32.totalorder %s27, 0
      %p66 = por %p64, %p65
      %s68 = sadd.s32 %s67, 1
      %p71 = scmp.eq.s32.totalorder %s21, 3
      %p72 = scmp.ne.s32.totalorder %s67, %s69
      %p73 = scmp.eq.s32.totalorder %s21, 0
      %p74 = por %p72, %p73
      %p75 = scmp.ne.s32.totalorder %s67, %s69
      %p76 = scmp.eq.s32.totalorder %s26, 3
      %p77 = por %p75, %p76
      %p78 = scmp.ne.s32.totalorder %s69, %s70
      %p79 = scmp.eq.s32.totalorder %s26, 0
      %p80 = por %p78, %p79
      %p81 = scmp.ne.s32.totalorder %s69, %s70
      %p82 = scmp.eq.s32.totalorder %s27, 3
      %p83 = por %p81, %p82
      %p85 = scmp.ne.s32.totalorder %s70, %s84
      %p86 = scmp.eq.s32.totalorder %s27, 0
      %p87 = por %p85, %p86
      %s89 = sadd.s32 %s88, 1
      %p92 = scmp.eq.s32.totalorder %s21, 3
      %p93 = scmp.ne.s32.totalorder %s88, %s90
      %p94 = scmp.eq.s32.totalorder %s21, 0
      %p95 = por %p93, %p94
      %p96 = scmp.ne.s32.totalorder %s88, %s90
      %p97 = scmp.eq.s32.totalorder %s26, 3
      %p98 = por %p96, %p97
      %p99 = scmp.ne.s32.totalorder %s90, %s91
      %p100 = scmp.eq.s32.totalorder %s26, 0
      %p101 = por %p99, %p100
      %p102 = scmp.ne.s32.totalorder %s90, %s91
      %p103 = scmp.eq.s32.totalorder %s27, 3
      %p104 = por %p102, %p103
      %p106 = scmp.ne.s32.totalorder %s91, %s105
      %p107 = scmp.eq.s32.totalorder %s27, 0
      %p108 = por %p106, %p107
      %s110 = sadd.s32 %s109, 1
      %p113 = scmp.eq.s32.totalorder %s21, 3
      %p114 = scmp.ne.s32.totalorder %s109, %s111
      %p115 = scmp.eq.s32.totalorder %s21, 0
      %p116 = por %p114, %p115
      %p117 = scmp.ne.s32.totalorder %s109, %s111
      %p118 = scmp.eq.s32.totalorder %s26, 3
      %p119 = por %p117, %p118
      %p120 = scmp.ne.s32.totalorder %s111, %s112
      %p121 = scmp.eq.s32.totalorder %s26, 0
      %p122 = por %p120, %p121
      %p123 = scmp.ne.s32.totalorder %s111, %s112
      %p124 = scmp.eq.s32.totalorder %s27, 3
      %p125 = por %p123, %p124
      %p127 = scmp.ne.s32.totalorder %s112, %s126
      %p128 = scmp.eq.s32.totalorder %s27, 0
      %p129 = por %p127, %p128
      %s131 = sadd.s32 %s130, 1
      %p134 = scmp.eq.s32.totalorder %s21, 3
      %p135 = scmp.ne.s32.totalorder %s130, %s132
      %p136 = scmp.eq.s32.totalorder %s21, 0
      %p137 = por %p135, %p136
      %p138 = scmp.ne.s32.totalorder %s130, %s132
      %p139 = scmp.eq.s32.totalorder %s26, 3
      %p140 = por %p138, %p139
      %p141 = scmp.ne.s32.totalorder %s132, %s133
      %p142 = scmp.eq.s32.totalorder %s26, 0
      %p143 = por %p141, %p142
      %p144 = scmp.ne.s32.totalorder %s132, %s133
      %p145 = scmp.eq.s32.totalorder %s27, 3
      %p146 = por %p144, %p145
      %p148 = scmp.ne.s32.totalorder %s133, %s147
      %p149 = scmp.eq.s32.totalorder %s27, 0
      %p150 = por %p148, %p149
      %s151 = ssub.s32 %s29, %s36
      %p152 = scmp.eq.s32.totalorder %s151, 0
      %s154 = sadd.s32 %s153, 1
      %s155 = scalar_select %p152, %s153, %s154
      %p158 = pneg %p152
      %p159 = scmp.eq.s32.totalorder %s21, 3
      %p160 = por %p158, %p159
      %p161 = scmp.ne.s32.totalorder %s153, %s156
      %p162 = scmp.eq.s32.totalorder %s21, 0
      %p163 = por %p161, %p162
      %p164 = scmp.ne.s32.totalorder %s153, %s156
      %p165 = scmp.eq.s32.totalorder %s26, 3
      %p166 = por %p164, %p165
      %p167 = scmp.ne.s32.totalorder %s156, %s157
      %p168 = scmp.eq.s32.totalorder %s26, 0
      %p169 = por %p167, %p168
      %p170 = scmp.ne.s32.totalorder %s156, %s157
      %p171 = scmp.eq.s32.totalorder %s27, 3
      %p172 = por %p170, %p171
      %p174 = scmp.ne.s32.totalorder %s157, %s173
      %p175 = scmp.eq.s32.totalorder %s27, 0
      %p176 = por %p174, %p175
      %s177 = ssub.s32 %s29, %s36
      %p178 = scmp.eq.s32.totalorder %s177, 0
      %s180 = sadd.s32 %s179, 1
      %s181 = scalar_select %p178, %s179, %s180
      %p184 = pneg %p178
      %p185 = scmp.eq.s32.totalorder %s21, 3
      %p186 = por %p184, %p185
      %p187 = scmp.ne.s32.totalorder %s179, %s182
      %p188 = scmp.eq.s32.totalorder %s21, 0
      %p189 = por %p187, %p188
      %p190 = scmp.ne.s32.totalorder %s179, %s182
      %p191 = scmp.eq.s32.totalorder %s26, 3
      %p192 = por %p190, %p191
      %p193 = scmp.ne.s32.totalorder %s182, %s183
      %p194 = scmp.eq.s32.totalorder %s26, 0
      %p195 = por %p193, %p194
      %p196 = scmp.ne.s32.totalorder %s182, %s183
      %p197 = scmp.eq.s32.totalorder %s27, 3
      %p198 = por %p196, %p197
      %p200 = scmp.ne.s32.totalorder %s183, %s199
      %p201 = scmp.eq.s32.totalorder %s27, 0
      %p202 = por %p200, %p201
      %s203 = ssub.s32 %s29, %s36
      %p204 = scmp.eq.s32.totalorder %s203, 0
      %s206 = sadd.s32 %s205, 1
      %s207 = scalar_select %p204, %s205, %s206
      %p210 = pneg %p204
      %p211 = scmp.eq.s32.totalorder %s21, 3
      %p212 = por %p210, %p211
      %p213 = scmp.ne.s32.totalorder %s205, %s208
      %p214 = scmp.eq.s32.totalorder %s21, 0
      %p215 = por %p213, %p214
      %p216 = scmp.ne.s32.totalorder %s205, %s208
      %p217 = scmp.eq.s32.totalorder %s26, 3
      %p218 = por %p216, %p217
      %p219 = scmp.ne.s32.totalorder %s208, %s209
      %p220 = scmp.eq.s32.totalorder %s26, 0
      %p221 = por %p219, %p220
      %p222 = scmp.ne.s32.totalorder %s208, %s209
      %p223 = scmp.eq.s32.totalorder %s27, 3
      %p224 = por %p222, %p223
      %p226 = scmp.ne.s32.totalorder %s209, %s225
      %p227 = scmp.eq.s32.totalorder %s27, 0
      %p228 = por %p226, %p227
      %s229 = ssub.s32 %s29, %s36
      %p230 = scmp.eq.s32.totalorder %s229, 0
      %s232 = sadd.s32 %s231, 1
      %s233 = scalar_select %p230, %s231, %s232
      %p236 = pneg %p230
      %p237 = scmp.eq.s32.totalorder %s21, 3
      %p238 = por %p236, %p237
      %p239 = scmp.ne.s32.totalorder %s231, %s234
      %p240 = scmp.eq.s32.totalorder %s21, 0
      %p241 = por %p239, %p240
      %p242 = scmp.ne.s32.totalorder %s231, %s234
      %p243 = scmp.eq.s32.totalorder %s26, 3
      %p244 = por %p242, %p243
      %p245 = scmp.ne.s32.totalorder %s234, %s235
      %p246 = scmp.eq.s32.totalorder %s26, 0
      %p247 = por %p245, %p246
      %p248 = scmp.ne.s32.totalorder %s234, %s235
      %p249 = scmp.eq.s32.totalorder %s27, 3
      %p250 = por %p248, %p249
      %p252 = scmp.ne.s32.totalorder %s235, %s251
      %p253 = scmp.eq.s32.totalorder %s27, 0
      %p254 = por %p252, %p253
      %s255 = ssub.s32 %s29, %s36
      %p256 = scmp.eq.s32.totalorder %s255, 0
      %s258 = sadd.s32 %s257, 1
      %s259 = scalar_select %p256, %s257, %s258
      %p262 = pneg %p256
      %p263 = scmp.eq.s32.totalorder %s21, 3
      %p264 = por %p262, %p263
      %p265 = scmp.ne.s32.totalorder %s257, %s260
      %p266 = scmp.eq.s32.totalorder %s21, 0
      %p267 = por %p265, %p266
      %p268 = scmp.ne.s32.totalorder %s257, %s260
      %p269 = scmp.eq.s32.totalorder %s26, 3
      %p270 = por %p268, %p269
      %p271 = scmp.ne.s32.totalorder %s260, %s261
      %p272 = scmp.eq.s32.totalorder %s26, 0
      %p273 = por %p271, %p272
      %p274 = scmp.ne.s32.totalorder %s260, %s261
      %p275 = scmp.eq.s32.totalorder %s27, 3
      %p276 = por %p274, %p275
      %p278 = scmp.ne.s32.totalorder %s261, %s277
      %p279 = scmp.eq.s32.totalorder %s27, 0
      %p280 = por %p278, %p279
      %s281 = ssub.s32 %s28, %s40
      %p282 = scmp.eq.s32.totalorder %s281, 0
      %s284 = sadd.s32 %s283, 1
      %s285 = scalar_select %p282, %s283, %s284
      %p288 = pneg %p282
      %p289 = scmp.eq.s32.totalorder %s21, 3
      %p290 = por %p288, %p289
      %p291 = scmp.ne.s32.totalorder %s283, %s286
      %p292 = scmp.eq.s32.totalorder %s21, 0
      %p293 = por %p291, %p292
      %p294 = scmp.ne.s32.totalorder %s283, %s286
      %p295 = scmp.eq.s32.totalorder %s26, 3
      %p296 = por %p294, %p295
      %p297 = scmp.ne.s32.totalorder %s286, %s287
      %p298 = scmp.eq.s32.totalorder %s26, 0
      %p299 = por %p297, %p298
      %p300 = scmp.ne.s32.totalorder %s286, %s287
      %p301 = scmp.eq.s32.totalorder %s27, 3
      %p302 = por %p300, %p301
      %p304 = scmp.ne.s32.totalorder %s287, %s303
      %p305 = scmp.eq.s32.totalorder %s27, 0
      %p306 = por %p304, %p305
      %p307 = scmp.le.s32.totalorder 1, %s21
      %p308 = scmp.lt.s32.totalorder %s21, 5
      %p309 = pnand %p307, %p308
      %p310 = pneg %p309
      // Predicated region
      $region9: #{tpu_custom_call.1} parent=5 // pred_check
        _
      $region10: #{tpu_custom_call.1} parent=5 // pred_check_branch
        %312 = sbr.rel (%p309) target = $region12
      $region11: #{tpu_custom_call.1} parent=5 // pred_region
        %s313 = ssub.s32 %s21, 1
        // Predicated region
        $region13: #{tpu_custom_call.1} parent=11 // pred_check
          %p314 = pneg %p80
        $region14: #{tpu_custom_call.1} parent=11 // pred_check_branch
          %316 = sbr.rel (%p314) target = $region16
        $region15: #{tpu_custom_call.1} parent=11 // pred_region
          %318 = vsyncadd [#allocation6], 0
          %s320 = sshll.u32 %s1, 4
          %s321 = int_to_ptr.hbm [resolvable:$true] %s320
          %s322 = sshll.u32 [#allocation5], 4
          %s323 = int_to_ptr.vmem [resolvable:$true] %s322
          %325 = dma.hbm_to_vmem [thread:$0]  %s321, 128, %s323, [#allocation6]
        $region16: #{tpu_custom_call.1} parent=11 // pred_fallthru
          _
        // Predicated region
        $region17: #{tpu_custom_call.1} parent=11 // pred_check
          %p326 = pneg %p101
        $region18: #{tpu_custom_call.1} parent=11 // pred_check_branch
          %328 = sbr.rel (%p326) target = $region20
        $region19: #{tpu_custom_call.1} parent=11 // pred_region
          %330 = vsyncadd [#allocation9], 0
          %s332 = sshll.u32 %s2, 4
          %s333 = int_to_ptr.hbm [resolvable:$true] %s332
          %s334 = sshll.u32 [#allocation8], 4
          %s335 = int_to_ptr.vmem [resolvable:$true] %s334
          %337 = dma.hbm_to_vmem [thread:$0]  %s333, 16, %s335, [#allocation9]
        $region20: #{tpu_custom_call.1} parent=11 // pred_fallthru
          _
        // Predicated region
        $region21: #{tpu_custom_call.1} parent=11 // pred_check
          %p338 = pneg %p122
        $region22: #{tpu_custom_call.1} parent=11 // pred_check_branch
          %340 = sbr.rel (%p338) target = $region24
        $region23: #{tpu_custom_call.1} parent=11 // pred_region
          _
        $region24: #{tpu_custom_call.1} parent=11 // pred_fallthru
          _
        // Predicated region
        $region25: #{tpu_custom_call.1} parent=11 // pred_check
          %p341 = pneg %p143
        $region26: #{tpu_custom_call.1} parent=11 // pred_check_branch
          %343 = sbr.rel (%p341) target = $region28
        $region27: #{tpu_custom_call.1} parent=11 // pred_region
          _
        $region28: #{tpu_custom_call.1} parent=11 // pred_fallthru
          _
      $region12: #{tpu_custom_call.1} parent=5 // pred_fallthru
        _
      %p344 = scmp.lt.s32.totalorder %s21, 4
      // Predicated region
      $region29: #{tpu_custom_call.1} parent=5 // pred_check
        %p345 = pneg %p344
      $region30: #{tpu_custom_call.1} parent=5 // pred_check_branch
        %347 = sbr.rel (%p345) target = $region32
      $region31: #{tpu_custom_call.1} parent=5 // pred_region
        // Predicated region
        $region33: #{tpu_custom_call.1} parent=31 // pred_check
          %p348 = pneg %p53
        $region34: #{tpu_custom_call.1} parent=31 // pred_check_branch
          %350 = sbr.rel (%p348) target = $region36
        $region35: #{tpu_custom_call.1} parent=31 // pred_region
          %p351 = scmp.lt.s32.totalorder %s28, 1
          %s352 = scalar_select %p351, %s28, 1
          %s353 = smul.addr %s352, 2
          %s354 = smul.addr %s353, 8
          %s355 = scalar_lea.vmem %s0, %s354
        $region36: #{tpu_custom_call.1} parent=31 // pred_fallthru
          _
        // Predicated region
        $region37: #{tpu_custom_call.1} parent=31 // pred_check
          %p356 = pneg %p163
        $region38: #{tpu_custom_call.1} parent=31 // pred_check_branch
          %358 = sbr.rel (%p356) target = $region40
        $region39: #{tpu_custom_call.1} parent=31 // pred_region
          %p359 = scmp.lt.s32.totalorder %s29, 1
          %s360 = scalar_select %p359, %s29, 1
          %s361 = smul.addr %s360, 4
          %s362 = smul.addr %s361, 8
          %s363 = scalar_lea.vmem %s5, %s362
        $region40: #{tpu_custom_call.1} parent=31 // pred_fallthru
          _
        // Predicated region
        $region41: #{tpu_custom_call.1} parent=31 // pred_check
          %p364 = pneg %p189
        $region42: #{tpu_custom_call.1} parent=31 // pred_check_branch
          %366 = sbr.rel (%p364) target = $region44
        $region43: #{tpu_custom_call.1} parent=31 // pred_region
          %p367 = scmp.lt.s32.totalorder %s29, 1
          %s368 = scalar_select %p367, %s29, 1
          %s369 = smul.addr %s368, 4
          %s370 = smul.addr %s369, 8
          %s371 = scalar_lea.vmem %s6, %s370
        $region44: #{tpu_custom_call.1} parent=31 // pred_fallthru
          _
        // Predicated region
        $region45: #{tpu_custom_call.1} parent=31 // pred_check
          %p372 = pneg %p215
        $region46: #{tpu_custom_call.1} parent=31 // pred_check_branch
          %374 = sbr.rel (%p372) target = $region48
        $region47: #{tpu_custom_call.1} parent=31 // pred_region
          %p375 = scmp.lt.s32.totalorder %s29, 1
          %s376 = scalar_select %p375, %s29, 1
          %s377 = smul.addr %s376, 4
          %s378 = smul.addr %s377, 8
          %s379 = scalar_lea.vmem %s7, %s378
        $region48: #{tpu_custom_call.1} parent=31 // pred_fallthru
          _
        // Predicated region
        $region49: #{tpu_custom_call.1} parent=31 // pred_check
          %p380 = pneg %p241
        $region50: #{tpu_custom_call.1} parent=31 // pred_check_branch
          %382 = sbr.rel (%p380) target = $region52
        $region51: #{tpu_custom_call.1} parent=31 // pred_region
          %p383 = scmp.lt.s32.totalorder %s29, 1
          %s384 = scalar_select %p383, %s29, 1
          %s385 = smul.addr %s384, 8
          %s386 = smul.addr %s385, 8
          %s387 = scalar_lea.vmem %s8, %s386
        $region52: #{tpu_custom_call.1} parent=31 // pred_fallthru
          _
        // Predicated region
        $region53: #{tpu_custom_call.1} parent=31 // pred_check
          %p388 = pneg %p267
        $region54: #{tpu_custom_call.1} parent=31 // pred_check_branch
          %390 = sbr.rel (%p388) target = $region56
        $region55: #{tpu_custom_call.1} parent=31 // pred_region
          %p391 = scmp.lt.s32.totalorder %s29, 1
          %s392 = scalar_select %p391, %s29, 1
          %s393 = smul.addr %s392, 8
          %s394 = scalar_lea.vmem %s9, %s393
        $region56: #{tpu_custom_call.1} parent=31 // pred_fallthru
          _
      $region32: #{tpu_custom_call.1} parent=5 // pred_fallthru
        _
      %p395 = scmp.le.s32.totalorder 1, %s21
      %p396 = scmp.lt.s32.totalorder %s21, 5
      %p397 = pnand %p395, %p396
      %p398 = pneg %p397
      // Predicated region
      $region57: #{tpu_custom_call.1} parent=5 // pred_check
        _
      $region58: #{tpu_custom_call.1} parent=5 // pred_check_branch
        %400 = sbr.rel (%p397) target = $region60
      $region59: #{tpu_custom_call.1} parent=5 // pred_region
        %s401 = ssub.s32 %s21, 1
        // Predicated region
        $region61: #{tpu_custom_call.1} parent=59 // pred_check
          %p402 = pneg %p80
        $region62: #{tpu_custom_call.1} parent=59 // pred_check_branch
          %404 = sbr.rel (%p402) target = $region64
        $region63: #{tpu_custom_call.1} parent=59 // pred_region
          %406 = dma.done [#allocation6], 128
        $region64: #{tpu_custom_call.1} parent=59 // pred_fallthru
          _
        // Predicated region
        $region65: #{tpu_custom_call.1} parent=59 // pred_check
          %p407 = pneg %p101
        $region66: #{tpu_custom_call.1} parent=59 // pred_check_branch
          %409 = sbr.rel (%p407) target = $region68
        $region67: #{tpu_custom_call.1} parent=59 // pred_region
          %411 = dma.done [#allocation9], 16
        $region68: #{tpu_custom_call.1} parent=59 // pred_fallthru
          _
        %p412 = scmp.lt.s32.totalorder %s30, 1
        %s413 = scalar_select %p412, %s30, 1
        %s414 = smul.addr %s413, 2
        %s415 = smul.addr %s414, 8
        %s416 = scalar_lea.vmem %s0, %s415
        %p417 = pneg %p59
        %p418 = pneg %p56
        %p419 = pneg %p80
        %p420 = pneg %p77
        %p421 = pneg %p101
        %p422 = pneg %p98
        %p423 = pneg %p122
        %p424 = pneg %p119
        %p425 = pneg %p143
        %p426 = pneg %p140
        %p427 = scmp.lt.s32.totalorder %s31, 1
        %s428 = scalar_select %p427, %s31, 1
        %s429 = smul.addr %s428, 4
        %s430 = smul.addr %s429, 8
        %s431 = scalar_lea.vmem %s5, %s430
        %p432 = pneg %p169
        %p433 = pneg %p166
        %p434 = scmp.lt.s32.totalorder %s31, 1
        %s435 = scalar_select %p434, %s31, 1
        %s436 = smul.addr %s435, 4
        %s437 = smul.addr %s436, 8
        %s438 = scalar_lea.vmem %s6, %s437
        %p439 = pneg %p195
        %p440 = pneg %p192
        %p441 = scmp.lt.s32.totalorder %s31, 1
        %s442 = scalar_select %p441, %s31, 1
        %s443 = smul.addr %s442, 4
        %s444 = smul.addr %s443, 8
        %s445 = scalar_lea.vmem %s7, %s444
        %p446 = pneg %p221
        %p447 = pneg %p218
        %p448 = scmp.lt.s32.totalorder %s31, 1
        %s449 = scalar_select %p448, %s31, 1
        %s450 = smul.addr %s449, 8
        %s451 = smul.addr %s450, 8
        %s452 = scalar_lea.vmem %s8, %s451
        %p453 = pneg %p247
        %p454 = pneg %p244
        %p455 = scmp.lt.s32.totalorder %s31, 1
        %s456 = scalar_select %p455, %s31, 1
        %s457 = smul.addr %s456, 8
        %s458 = scalar_lea.vmem %s9, %s457
        %p459 = pneg %p273
        %p460 = pneg %p270
        %p461 = pneg %p299
        %p462 = pneg %p296
        %s463 = sand.u32 %s286, 1
        %s464 = scalar_lea.sflag [#allocation7], %s463
        %s465 = sand.u32 %s286, 1
        %s466 = smul.addr %s465, 4
        %s467 = scalar_lea.vmem [#allocation10], %s466
        %p468 = scmp.lt.s32.totalorder %s30, 1
        %s469 = scalar_select %p468, %s30, 1
        %s470 = smul.addr %s469, 2
        %s471 = smul.addr %s470, 8
        %s472 = scalar_lea.vmem %s0, %s471
        %p473 = scmp.lt.s32.totalorder %s31, 1
        %s474 = scalar_select %p473, %s31, 1
        %s475 = smul.addr %s474, 4
        %s476 = smul.addr %s475, 8
        %s477 = scalar_lea.vmem %s5, %s476
        %p478 = scmp.lt.s32.totalorder %s31, 1
        %s479 = scalar_select %p478, %s31, 1
        %s480 = smul.addr %s479, 4
        %s481 = smul.addr %s480, 8
        %s482 = scalar_lea.vmem %s6, %s481
        %p483 = scmp.lt.s32.totalorder %s31, 1
        %s484 = scalar_select %p483, %s31, 1
        %s485 = smul.addr %s484, 4
        %s486 = smul.addr %s485, 8
        %s487 = scalar_lea.vmem %s7, %s486
        %p488 = scmp.lt.s32.totalorder %s31, 1
        %s489 = scalar_select %p488, %s31, 1
        %s490 = smul.addr %s489, 8
        %s491 = smul.addr %s490, 8
        %s492 = scalar_lea.vmem %s8, %s491
        %p493 = scmp.lt.s32.totalorder %s31, 1
        %s494 = scalar_select %p493, %s31, 1
        %s495 = smul.addr %s494, 8
        %s496 = scalar_lea.vmem %s9, %s495
        %p497 = scmp.eq.s32.totalorder %s31, 0
        // Predicated region
        $region69: #{tpu_custom_call.1} parent=59 // pred_check
          %p498 = pneg %p497
        $region70: #{tpu_custom_call.1} parent=59 // pred_check_branch
          %500 = sbr.rel (%p498) target = $region72
        $region71: #{tpu_custom_call.1} parent=59 // pred_region
          %v501 = vlaneseq
          %v502 = vshrl.u32 %v501, 7
          %v503 = vadd.s32 %v502, 8
          %v504 = vlaneseq
          %v505 = vand.u32 %v504, 127
          %vm506 = vcmp.lt.s32.totalorder %v505, 8
          %vm507 = vcmp.ge.s32.totalorder %v505, 8
          %vm508 = vcmp.lt.s32.totalorder %v505, 12
          %vm509 = vmand %vm507, %vm508
          %vm510 = vcmp.ge.s32.totalorder %v502, 8
          %vm511 = vcmp.ge.s32.totalorder %v503, 8
          %vm512 = vcmp.le.s32.totalorder %v505, %v502
          %vm513 = vcmp.le.s32.totalorder %v505, %v503
          %vm514 = vmor %vm510, %vm512
          %vm515 = vmor %vm511, %vm513
          %vm516 = vmand %vm506, %vm514
          %vm517 = vmand %vm506, %vm515
          %vm518 = vcmp.lt.s32.totalorder %v502, 12
          %vm519 = vcmp.lt.s32.totalorder %v503, 12
          %vm520 = vmand %vm510, %vm518
          %vm521 = vmand %vm511, %vm519
          %vm522 = vmand %vm520, %vm512
          %vm523 = vmand %vm521, %vm513
          %vm524 = vcmp.ge.s32.totalorder %v502, 12
          %vm525 = vcmp.ge.s32.totalorder %v503, 12
          %v526 = vsub.s32 %v502, 4
          %v527 = vsub.s32 %v503, 4
          %vm528 = vcmp.lt.s32.totalorder %v505, %v526
          %vm529 = vcmp.lt.s32.totalorder %v505, %v527
          %vm530 = vmand %vm524, %vm528
          %vm531 = vmand %vm525, %vm529
          %vm532 = vmor %vm522, %vm530
          %vm533 = vmor %vm523, %vm531
          %vm534 = vmand %vm509, %vm532
          %vm535 = vmand %vm509, %vm533
          %vm536 = vmor %vm516, %vm534
          %vm537 = vmor %vm517, %vm535
          %v538 = vsel %vm536, 0.0, -1e+30
          %v539 = vsel %vm537, 0.0, -1e+30
          %vm540 = vcmask 130048
          %541 = vst.msk [vmem:[#allocation4] sm:$0xff] %vm540, %v538
          %542 = vst.msk [vmem:[#allocation4 + $0x8] sm:$0xff] %vm540, %v539
          %v543 = vld [vmem:[%s472] sm:$0xff]
          %v544 = vld [vmem:[%s472 + $0x8] sm:$0xff]
          %v545 = vld [vmem:[#allocation5] sm:$0xff]
          %v546 = vld [vmem:[#allocation8] sm:$0x1]
          %v548 = vperm.slane %v546, 0
          %vm550 = vcmask 64512
          %v552 = vsel %vm550, %v543, 0
          %v555 = vsel %vm550, %v544, 0
          %557 = vmatpush.msra.mxu0 0.0
          %558 = vmatpush.msra.mxu0 0.0
          %559 = vmatpush.msra.mxu0 0.0
          %560 = vmatpush.msra.mxu0 0.0
          %561 = vmatpush.msra.mxu0 0.0
          %562 = vmatpush.msra.mxu0 0.0
          %563 = vmatpush.msra.mxu0 0.0
          %564 = vmatpush.msra.mxu0 0.0
          %565 = vmatpush.msra.mxu0 0.0
          %566 = vmatpush.msra.mxu0 0.0
          %567 = vmatpush.msra.mxu0 0.0
          %568 = vmatpush.msra.mxu0 0.0
          %569 = vmatpush.msra.mxu0 0.0
          %570 = vmatpush.msra.mxu0 0.0
          %571 = vmatpush.msra.mxu0 0.0
          %572 = vmatpush.msra.mxu0 %v545
          %573 = vmatmul.f32.gmra.mxu0 %v552
          %v574 = vpop.f32.mrf.mxu0
          %v575 = vadd.f32 %v548, %v574
          %576 = vmatmul.f32.gmra.mxu0 %v555
          %v577 = vpop.f32.mrf.mxu0
          %v578 = vadd.f32 %v548, %v577
          %579 = vdwg.mxu0
          %v580 = vmax.f32 %v575, 0.0
          %v581 = vmax.f32 %v578, 0.0
          %v582 = vld [vmem:[%s3] sm:$0xff]
          %v583 = vld [vmem:[%s3 + $0x8] sm:$0xff]
          %v584 = vld [vmem:[%s3 + $0x10] sm:$0xff]
          %v585 = vld [vmem:[%s3 + $0x18] sm:$0xff]
          %v586 = vld [vmem:[%s4] sm:$0x1]
          %v588 = vperm.slane %v586, 0
          %vm590 = vcmask 261120
          %v592 = vsel %vm590, %v580, 0
          %v595 = vsel %vm590, %v581, 0
          %597 = vmatpush.msra.mxu0 0.0
          %598 = vmatpush.msra.mxu0 0.0
          %599 = vmatpush.msra.mxu0 0.0
          %600 = vmatpush.msra.mxu0 0.0
          %601 = vmatpush.msra.mxu0 0.0
          %602 = vmatpush.msra.mxu0 0.0
          %603 = vmatpush.msra.mxu0 0.0
          %604 = vmatpush.msra.mxu0 0.0
          %605 = vmatpush.msra.mxu0 0.0
          %606 = vmatpush.msra.mxu0 0.0
          %607 = vmatpush.msra.mxu0 0.0
          %608 = vmatpush.msra.mxu0 0.0
          %609 = vmatpush.msra.mxu0 %v585
          %610 = vmatpush.msra.mxu0 %v584
          %611 = vmatpush.msra.mxu0 %v583
          %612 = vmatpush.msra.mxu0 %v582
          %613 = vmatmul.f32.gmra.mxu0 %v592
          %v614 = vpop.f32.mrf.mxu0
          %v615 = vadd.f32 %v588, %v614
          %616 = vmatmul.f32.gmra.mxu0 %v595
          %v617 = vpop.f32.mrf.mxu0
          %v618 = vadd.f32 %v588, %v617
          %619 = vdwg.mxu0
          %620 = vst.msk [vmem:[#allocation2] sm:$0xff] %vm590, %v615
          %621 = vst.msk [vmem:[#allocation2 + $0x8] sm:$0xff] %vm590, %v618
        $region72: #{tpu_custom_call.1} parent=59 // pred_fallthru
          _
        %v622 = vld [vmem:[#allocation2] sm:$0xff]
        %v623 = vld [vmem:[#allocation2 + $0x8] sm:$0xff]
        %v624 = vld [vmem:[%s496] sm:$0xff]
        %vm625 = vcmask 261120
        %v626 = vsel %vm625, %v622, 0.0
        %627 = vadd.xlane.f32.xlu0 %v626
        %v628 = vpop.xlane.xlu0 %627
        %v629 = vsel %vm625, %v623, 0.0
        %630 = vadd.xlane.f32.xlu0 %v629
        %v631 = vpop.xlane.xlu0 %630
        %v632 = vrcp.pop 32.0
        %v633 = vmul.f32 32.0, %v632
        %v634 = vsub.f32 1.0, %v633
        %v635 = vmul.f32 %v632, %v634
        %v636 = vadd.f32 %v632, %v635
        %vm637 = vweird.f32 %v632
        %v638 = vsel %vm637, %v632, %v636
        %v639 = vmul.f32 %v628, %v638
        %v640 = vmul.f32 %v631, %v638
        %v641 = vsub.f32 %v622, %v639
        %v642 = vsub.f32 %v623, %v640
        %v643 = vmul.f32 %v641, %v641
        %v644 = vmul.f32 %v642, %v642
        %v645 = vsel %vm625, %v643, 0.0
        %646 = vadd.xlane.f32.xlu0 %v645
        %v647 = vpop.xlane.xlu0 %646
        %v648 = vsel %vm625, %v644, 0.0
        %649 = vadd.xlane.f32.xlu0 %v648
        %v650 = vpop.xlane.xlu0 %649
        %v651 = vmul.f32 %v647, %v638
        %v652 = vmul.f32 %v650, %v638
        %v653 = vadd.f32 %v651, 1e-05
        %v654 = vadd.f32 %v652, 1e-05
        %v655 = vrsqrt.pop %v653
        %v656 = vmul.f32 %v655, %v653
        %v657 = vmul.f32 %v656, %v655
        %v658 = vmul.f32 0.5, %v657
        %v659 = vsub.f32 1.5, %v658
        %v660 = vmul.f32 %v655, %v659
        %vm661 = vweird.f32 %v653
        %vm662 = vweird.f32 %v655
        %vm663 = vmor %vm661, %vm662
        %v664 = vsel %vm663, %v655, %v660
        %v665 = vrsqrt.pop %v654
        %v666 = vmul.f32 %v665, %v654
        %v667 = vmul.f32 %v666, %v665
        %v668 = vmul.f32 0.5, %v667
        %v669 = vsub.f32 1.5, %v668
        %v670 = vmul.f32 %v665, %v669
        %vm671 = vweird.f32 %v654
        %vm672 = vweird.f32 %v665
        %vm673 = vmor %vm671, %vm672
        %v674 = vsel %vm673, %v665, %v670
        %v675 = vmul.f32 %v641, %v664
        %v676 = vmul.f32 %v642, %v674
        %v677 = vperm.slane %v624, 0
        %v678 = vmul.f32 %v675, %v677
        %v679 = vmul.f32 %v676, %v677
        %v680 = vperm.slane %v624, 1
        %v681 = vadd.f32 %v678, %v680
        %v682 = vadd.f32 %v679, %v680
        %v683 = vld [vmem:[%s477] sm:$0xff]
        %v684 = vld [vmem:[%s477 + $0x8] sm:$0xff]
        %v685 = vld [vmem:[%s477 + $0x10] sm:$0xff]
        %v686 = vld [vmem:[%s477 + $0x18] sm:$0xff]
        %v687 = vperm.slane %v624, 6
        %v689 = vsel %vm625, %v681, 0
        %v692 = vsel %vm625, %v682, 0
        %694 = vmatpush.msra.mxu0 0.0
        %695 = vmatpush.msra.mxu0 0.0
        %696 = vmatpush.msra.mxu0 0.0
        %697 = vmatpush.msra.mxu0 0.0
        %698 = vmatpush.msra.mxu0 0.0
        %699 = vmatpush.msra.mxu0 0.0
        %700 = vmatpush.msra.mxu0 0.0
        %701 = vmatpush.msra.mxu0 0.0
        %702 = vmatpush.msra.mxu0 0.0
        %703 = vmatpush.msra.mxu0 0.0
        %704 = vmatpush.msra.mxu0 0.0
        %705 = vmatpush.msra.mxu0 0.0
        %706 = vmatpush.msra.mxu0 %v686
        %707 = vmatpush.msra.mxu0 %v685
        %708 = vmatpush.msra.mxu0 %v684
        %709 = vmatpush.msra.mxu0 %v683
        %710 = vmatmul.f32.gmra.mxu0 %v689
        %v711 = vpop.f32.mrf.mxu0
        %v712 = vadd.f32 %v687, %v711
        %713 = vmatmul.f32.gmra.mxu0 %v692
        %v714 = vpop.f32.mrf.mxu0
        %v715 = vadd.f32 %v687, %v714
        %716 = vdwg.mxu0
        %v717 = vmul.f32 %v712, 0.25
        %v718 = vmul.f32 %v715, 0.25
        %v719 = vld [vmem:[#allocation4] sm:$0xff]
        %v720 = vld [vmem:[#allocation4 + $0x8] sm:$0xff]
        %723 = vrot.lane.b32.xlu0 %v712, 96
        %v724 = vpop.permute.xlu0 %723
        %725 = vrot.lane.b32.xlu0 %v715, 96
        %v726 = vpop.permute.xlu0 %725
        %vm727 = vcmask 130048
        %v729 = vsel %vm727, %v717, 0
        %v732 = vsel %vm727, %v718, 0
        %v734 = vsel %vm727, %v724, 0
        %v736 = vsel %vm727, %v726, 0
        %738 = vmatpush.xpose.msra.mxu0 0.0
        %739 = vmatpush.xpose.msra.mxu0 0.0
        %740 = vmatpush.xpose.msra.mxu0 0.0
        %741 = vmatpush.xpose.msra.mxu0 0.0
        %742 = vmatpush.xpose.msra.mxu0 0.0
        %743 = vmatpush.xpose.msra.mxu0 0.0
        %744 = vmatpush.xpose.msra.mxu0 0.0
        %745 = vmatpush.xpose.msra.mxu0 0.0
        %746 = vmatpush.xpose.msra.mxu0 0.0
        %747 = vmatpush.xpose.msra.mxu0 0.0
        %748 = vmatpush.xpose.msra.mxu0 0.0
        %749 = vmatpush.xpose.msra.mxu0 0.0
        %750 = vmatpush.xpose.msra.mxu0 0.0
        %751 = vmatpush.xpose.msra.mxu0 0.0
        %752 = vmatpush.xpose.msra.mxu0 %v736
        %753 = vmatpush.xpose.msra.mxu0 %v734
        %754 = vmatmul.f32.gmra.mxu0 %v729
        %v755 = vpop.f32.mrf.mxu0
        %v756 = vadd.f32 %v719, %v755
        %757 = vmatmul.f32.gmra.mxu0 %v732
        %v758 = vpop.f32.mrf.mxu0
        %v759 = vadd.f32 %v720, %v758
        %760 = vdwg.mxu0
        %v761 = vsel %vm727, %v756, -inf
        %762 = vmax.xlane.f32.xlu0 %v761
        %v763 = vpop.xlane.xlu0 %762
        %v764 = vsel %vm727, %v759, -inf
        %765 = vmax.xlane.f32.xlu0 %v764
        %v766 = vpop.xlane.xlu0 %765
        %v767 = vsub.f32 %v756, %v763
        %v768 = vsub.f32 %v759, %v766
        %v769 = vmul.f32 %v767, 1.442695
        %v770 = vpow.pop %v769
        %v771 = vmul.f32 %v768, 1.442695
        %v772 = vpow.pop %v771
        %v773 = vsel %vm727, %v770, 0.0
        %774 = vadd.xlane.f32.xlu0 %v773
        %v775 = vpop.xlane.xlu0 %774
        %v776 = vsel %vm727, %v772, 0.0
        %777 = vadd.xlane.f32.xlu0 %v776
        %v778 = vpop.xlane.xlu0 %777
        %v779 = vrcp.pop %v775
        %v780 = vmul.f32 %v775, %v779
        %v781 = vsub.f32 1.0, %v780
        %v782 = vmul.f32 %v779, %v781
        %v783 = vadd.f32 %v779, %v782
        %vm784 = vweird.f32 %v775
        %vm785 = vweird.f32 %v779
        %vm786 = vmor %vm784, %vm785
        %v787 = vsel %vm786, %v779, %v783
        %v788 = vand.u32 2147483647, %v775
        %vm789 = vcmp.eq.f32.partialorder %v788, 8.507059e+37
        %v790 = vand.u32 %v775, 2147483648
        %v791 = vor.u32 1.1754944e-38, %v790
        %v792 = vsel %vm789, %v791, %v787
        %v793 = vrcp.pop %v778
        %v794 = vmul.f32 %v778, %v793
        %v795 = vsub.f32 1.0, %v794
        %v796 = vmul.f32 %v793, %v795
        %v797 = vadd.f32 %v793, %v796
        %vm798 = vweird.f32 %v778
        %vm799 = vweird.f32 %v793
        %vm800 = vmor %vm798, %vm799
        %v801 = vsel %vm800, %v793, %v797
        %v802 = vand.u32 2147483647, %v778
        %vm803 = vcmp.eq.f32.partialorder %v802, 8.507059e+37
        %v804 = vand.u32 %v778, 2147483648
        %v805 = vor.u32 1.1754944e-38, %v804
        %v806 = vsel %vm803, %v805, %v801
        %v807 = vmul.f32 %v770, %v792
        %v808 = vmul.f32 %v772, %v806
        %809 = vrot.lane.b32.xlu0 %v712, 64
        %v810 = vpop.permute.xlu0 %809
        %811 = vrot.lane.b32.xlu0 %v715, 64
        %v812 = vpop.permute.xlu0 %811
        %v816 = vsel %vm727, %v807, 0
        %v819 = vsel %vm727, %v808, 0
        %821 = vmatpush.msra.mxu0 0.0
        %822 = vmatpush.msra.mxu0 0.0
        %823 = vmatpush.msra.mxu0 0.0
        %824 = vmatpush.msra.mxu0 0.0
        %825 = vmatpush.msra.mxu0 0.0
        %826 = vmatpush.msra.mxu0 0.0
        %827 = vmatpush.msra.mxu0 0.0
        %828 = vmatpush.msra.mxu0 0.0
        %829 = vmatpush.msra.mxu0 0.0
        %830 = vmatpush.msra.mxu0 0.0
        %831 = vmatpush.msra.mxu0 0.0
        %832 = vmatpush.msra.mxu0 0.0
        %833 = vmatpush.msra.mxu0 0.0
        %834 = vmatpush.msra.mxu0 0.0
        %835 = vmatpush.msra.mxu0 %v812
        %836 = vmatpush.msra.mxu0 %v810
        %837 = vmatmul.f32.gmra.mxu0 %v816
        %v838 = vpop.f32.mrf.mxu0
        %v839 = vadd.f32 0.0, %v838
        %840 = vmatmul.f32.gmra.mxu0 %v819
        %v841 = vpop.f32.mrf.mxu0
        %v842 = vadd.f32 0.0, %v841
        %843 = vdwg.mxu0
        %844 = vst.msk [vmem:[#allocation3] sm:$0xff] %vm727, %v839
        %845 = vst.msk [vmem:[#allocation3 + $0x8] sm:$0xff] %vm727, %v842
        %846 = vrot.lane.b32.xlu0 %v717, 112
        %v847 = vpop.permute.xlu0 %846
        %848 = vrot.lane.b32.xlu0 %v718, 112
        %v849 = vpop.permute.xlu0 %848
        %850 = vrot.lane.b32.xlu0 %v712, 80
        %v851 = vpop.permute.xlu0 %850
        %852 = vrot.lane.b32.xlu0 %v715, 80
        %v853 = vpop.permute.xlu0 %852
        %v854 = vsel %vm727, %v847, 0
        %v856 = vsel %vm727, %v849, 0
        %v858 = vsel %vm727, %v851, 0
        %v860 = vsel %vm727, %v853, 0
        %862 = vmatpush.xpose.msra.mxu0 0.0
        %863 = vmatpush.xpose.msra.mxu0 0.0
        %864 = vmatpush.xpose.msra.mxu0 0.0
        %865 = vmatpush.xpose.msra.mxu0 0.0
        %866 = vmatpush.xpose.msra.mxu0 0.0
        %867 = vmatpush.xpose.msra.mxu0 0.0
        %868 = vmatpush.xpose.msra.mxu0 0.0
        %869 = vmatpush.xpose.msra.mxu0 0.0
        %870 = vmatpush.xpose.msra.mxu0 0.0
        %871 = vmatpush.xpose.msra.mxu0 0.0
        %872 = vmatpush.xpose.msra.mxu0 0.0
        %873 = vmatpush.xpose.msra.mxu0 0.0
        %874 = vmatpush.xpose.msra.mxu0 0.0
        %875 = vmatpush.xpose.msra.mxu0 0.0
        %876 = vmatpush.xpose.msra.mxu0 %v860
        %877 = vmatpush.xpose.msra.mxu0 %v858
        %878 = vmatmul.f32.gmra.mxu0 %v854
        %v879 = vpop.f32.mrf.mxu0
        %v880 = vadd.f32 %v719, %v879
        %881 = vmatmul.f32.gmra.mxu0 %v856
        %v882 = vpop.f32.mrf.mxu0
        %v883 = vadd.f32 %v720, %v882
        %884 = vdwg.mxu0
        %v885 = vsel %vm727, %v880, -inf
        %886 = vmax.xlane.f32.xlu0 %v885
        %v887 = vpop.xlane.xlu0 %886
        %v888 = vsel %vm727, %v883, -inf
        %889 = vmax.xlane.f32.xlu0 %v888
        %v890 = vpop.xlane.xlu0 %889
        %v891 = vsub.f32 %v880, %v887
        %v892 = vsub.f32 %v883, %v890
        %v893 = vmul.f32 %v891, 1.442695
        %v894 = vpow.pop %v893
        %v895 = vmul.f32 %v892, 1.442695
        %v896 = vpow.pop %v895
        %v897 = vsel %vm727, %v894, 0.0
        %898 = vadd.xlane.f32.xlu0 %v897
        %v899 = vpop.xlane.xlu0 %898
        %v900 = vsel %vm727, %v896, 0.0
        %901 = vadd.xlane.f32.xlu0 %v900
        %v902 = vpop.xlane.xlu0 %901
        %v903 = vrcp.pop %v899
        %v904 = vmul.f32 %v899, %v903
        %v905 = vsub.f32 1.0, %v904
        %v906 = vmul.f32 %v903, %v905
        %v907 = vadd.f32 %v903, %v906
        %vm908 = vweird.f32 %v899
        %vm909 = vweird.f32 %v903
        %vm910 = vmor %vm908, %vm909
        %v911 = vsel %vm910, %v903, %v907
        %v912 = vand.u32 2147483647, %v899
        %vm913 = vcmp.eq.f32.partialorder %v912, 8.507059e+37
        %v914 = vand.u32 %v899, 2147483648
        %v915 = vor.u32 1.1754944e-38, %v914
        %v916 = vsel %vm913, %v915, %v911
        %v917 = vrcp.pop %v902
        %v918 = vmul.f32 %v902, %v917
        %v919 = vsub.f32 1.0, %v918
        %v920 = vmul.f32 %v917, %v919
        %v921 = vadd.f32 %v917, %v920
        %vm922 = vweird.f32 %v902
        %vm923 = vweird.f32 %v917
        %vm924 = vmor %vm922, %vm923
        %v925 = vsel %vm924, %v917, %v921
        %v926 = vand.u32 2147483647, %v902
        %vm927 = vcmp.eq.f32.partialorder %v926, 8.507059e+37
        %v928 = vand.u32 %v902, 2147483648
        %v929 = vor.u32 1.1754944e-38, %v928
        %v930 = vsel %vm927, %v929, %v925
        %v931 = vmul.f32 %v894, %v916
        %v932 = vmul.f32 %v896, %v930
        %933 = vrot.lane.b32.xlu0 %v712, 48
        %v934 = vpop.permute.xlu0 %933
        %935 = vrot.lane.b32.xlu0 %v715, 48
        %v936 = vpop.permute.xlu0 %935
        %v940 = vsel %vm727, %v931, 0
        %v943 = vsel %vm727, %v932, 0
        %945 = vmatpush.msra.mxu0 0.0
        %946 = vmatpush.msra.mxu0 0.0
        %947 = vmatpush.msra.mxu0 0.0
        %948 = vmatpush.msra.mxu0 0.0
        %949 = vmatpush.msra.mxu0 0.0
        %950 = vmatpush.msra.mxu0 0.0
        %951 = vmatpush.msra.mxu0 0.0
        %952 = vmatpush.msra.mxu0 0.0
        %953 = vmatpush.msra.mxu0 0.0
        %954 = vmatpush.msra.mxu0 0.0
        %955 = vmatpush.msra.mxu0 0.0
        %956 = vmatpush.msra.mxu0 0.0
        %957 = vmatpush.msra.mxu0 0.0
        %958 = vmatpush.msra.mxu0 0.0
        %959 = vmatpush.msra.mxu0 %v936
        %960 = vmatpush.msra.mxu0 %v934
        %961 = vmatmul.f32.gmra.mxu0 %v940
        %v962 = vpop.f32.mrf.mxu0
        %v963 = vadd.f32 0.0, %v962
        %964 = vmatmul.f32.gmra.mxu0 %v943
        %v965 = vpop.f32.mrf.mxu0
        %v966 = vadd.f32 0.0, %v965
        %967 = vdwg.mxu0
        %970 = vrot.lane.b32.xlu0 %v963, 16
        %v971 = vpop.permute.xlu0 %970
        %972 = vrot.lane.b32.xlu0 %v966, 16
        %v973 = vpop.permute.xlu0 %972
        %vm976 = vcmask 261248
        %977 = vst.msk [vmem:[#allocation3] sm:$0xff] %vm976, %v971
        %978 = vst.msk [vmem:[#allocation3 + $0x8] sm:$0xff] %vm976, %v973
        %v979 = vld [vmem:[#allocation3] sm:$0xff]
        %v980 = vld [vmem:[#allocation3 + $0x8] sm:$0xff]
        %v981 = vld [vmem:[%s482] sm:$0xff]
        %v982 = vld [vmem:[%s482 + $0x8] sm:$0xff]
        %v983 = vld [vmem:[%s482 + $0x10] sm:$0xff]
        %v984 = vld [vmem:[%s482 + $0x18] sm:$0xff]
        %v986 = vsel %vm625, %v979, 0
        %v989 = vsel %vm625, %v980, 0
        %991 = vmatpush.msra.mxu0 0.0
        %992 = vmatpush.msra.mxu0 0.0
        %993 = vmatpush.msra.mxu0 0.0
        %994 = vmatpush.msra.mxu0 0.0
        %995 = vmatpush.msra.mxu0 0.0
        %996 = vmatpush.msra.mxu0 0.0
        %997 = vmatpush.msra.mxu0 0.0
        %998 = vmatpush.msra.mxu0 0.0
        %999 = vmatpush.msra.mxu0 0.0
        %1000 = vmatpush.msra.mxu0 0.0
        %1001 = vmatpush.msra.mxu0 0.0
        %1002 = vmatpush.msra.mxu0 0.0
        %1003 = vmatpush.msra.mxu0 %v984
        %1004 = vmatpush.msra.mxu0 %v983
        %1005 = vmatpush.msra.mxu0 %v982
        %1006 = vmatpush.msra.mxu0 %v981
        %1007 = vmatmul.f32.gmra.mxu0 %v986
        %v1008 = vpop.f32.mrf.mxu0
        %v1009 = vadd.f32 0.0, %v1008
        %1010 = vmatmul.f32.gmra.mxu0 %v989
        %v1011 = vpop.f32.mrf.mxu0
        %v1012 = vadd.f32 0.0, %v1011
        %1013 = vdwg.mxu0
        %v1014 = vadd.f32 %v622, %v1009
        %v1015 = vadd.f32 %v623, %v1012
        %v1016 = vperm.slane %v624, 2
        %v1017 = vadd.f32 %v1014, %v1016
        %v1018 = vadd.f32 %v1015, %v1016
        %v1019 = vsel %vm625, %v1017, 0.0
        %1020 = vadd.xlane.f32.xlu0 %v1019
        %v1021 = vpop.xlane.xlu0 %1020
        %v1022 = vsel %vm625, %v1018, 0.0
        %1023 = vadd.xlane.f32.xlu0 %v1022
        %v1024 = vpop.xlane.xlu0 %1023
        %v1025 = vmul.f32 %v1021, %v638
        %v1026 = vmul.f32 %v1024, %v638
        %v1027 = vsub.f32 %v1017, %v1025
        %v1028 = vsub.f32 %v1018, %v1026
        %v1029 = vmul.f32 %v1027, %v1027
        %v1030 = vmul.f32 %v1028, %v1028
        %v1031 = vsel %vm625, %v1029, 0.0
        %1032 = vadd.xlane.f32.xlu0 %v1031
        %v1033 = vpop.xlane.xlu0 %1032
        %v1034 = vsel %vm625, %v1030, 0.0
        %1035 = vadd.xlane.f32.xlu0 %v1034
        %v1036 = vpop.xlane.xlu0 %1035
        %v1037 = vmul.f32 %v1033, %v638
        %v1038 = vmul.f32 %v1036, %v638
        %v1039 = vadd.f32 %v1037, 1e-05
        %v1040 = vadd.f32 %v1038, 1e-05
        %v1041 = vrsqrt.pop %v1039
        %v1042 = vmul.f32 %v1041, %v1039
        %v1043 = vmul.f32 %v1042, %v1041
        %v1044 = vmul.f32 0.5, %v1043
        %v1045 = vsub.f32 1.5, %v1044
        %v1046 = vmul.f32 %v1041, %v1045
        %vm1047 = vweird.f32 %v1039
        %vm1048 = vweird.f32 %v1041
        %vm1049 = vmor %vm1047, %vm1048
        %v1050 = vsel %vm1049, %v1041, %v1046
        %v1051 = vrsqrt.pop %v1040
        %v1052 = vmul.f32 %v1051, %v1040
        %v1053 = vmul.f32 %v1052, %v1051
        %v1054 = vmul.f32 0.5, %v1053
        %v1055 = vsub.f32 1.5, %v1054
        %v1056 = vmul.f32 %v1051, %v1055
        %vm1057 = vweird.f32 %v1040
        %vm1058 = vweird.f32 %v1051
        %vm1059 = vmor %vm1057, %vm1058
        %v1060 = vsel %vm1059, %v1051, %v1056
        %v1061 = vmul.f32 %v1027, %v1050
        %v1062 = vmul.f32 %v1028, %v1060
        %v1063 = vperm.slane %v624, 3
        %v1064 = vmul.f32 %v1061, %v1063
        %v1065 = vmul.f32 %v1062, %v1063
        %v1066 = vperm.slane %v624, 4
        %v1067 = vadd.f32 %v1064, %v1066
        %v1068 = vadd.f32 %v1065, %v1066
        %v1069 = vld [vmem:[%s487] sm:$0xff]
        %v1070 = vld [vmem:[%s487 + $0x8] sm:$0xff]
        %v1071 = vld [vmem:[%s487 + $0x10] sm:$0xff]
        %v1072 = vld [vmem:[%s487 + $0x18] sm:$0xff]
        %v1073 = vperm.slane %v624, 7
        %v1075 = vsel %vm625, %v1067, 0
        %v1078 = vsel %vm625, %v1068, 0
        %1080 = vmatpush.msra.mxu0 0.0
        %1081 = vmatpush.msra.mxu0 0.0
        %1082 = vmatpush.msra.mxu0 0.0
        %1083 = vmatpush.msra.mxu0 0.0
        %1084 = vmatpush.msra.mxu0 0.0
        %1085 = vmatpush.msra.mxu0 0.0
        %1086 = vmatpush.msra.mxu0 0.0
        %1087 = vmatpush.msra.mxu0 0.0
        %1088 = vmatpush.msra.mxu0 0.0
        %1089 = vmatpush.msra.mxu0 0.0
        %1090 = vmatpush.msra.mxu0 0.0
        %1091 = vmatpush.msra.mxu0 0.0
        %1092 = vmatpush.msra.mxu0 %v1072
        %1093 = vmatpush.msra.mxu0 %v1071
        %1094 = vmatpush.msra.mxu0 %v1070
        %1095 = vmatpush.msra.mxu0 %v1069
        %1096 = vmatmul.f32.gmra.mxu0 %v1075
        %v1097 = vpop.f32.mrf.mxu0
        %v1098 = vadd.f32 %v1073, %v1097
        %1099 = vmatmul.f32.gmra.mxu0 %v1078
        %v1100 = vpop.f32.mrf.mxu0
        %v1101 = vadd.f32 %v1073, %v1100
        %1102 = vdwg.mxu0
        %v1103 = vmax.f32 %v1098, 0.0
        %v1104 = vmax.f32 %v1101, 0.0
        %v1105 = vld [vmem:[%s492] sm:$0xff]
        %v1106 = vld [vmem:[%s492 + $0x8] sm:$0xff]
        %v1107 = vld [vmem:[%s492 + $0x10] sm:$0xff]
        %v1108 = vld [vmem:[%s492 + $0x18] sm:$0xff]
        %v1109 = vld [vmem:[%s492 + $0x20] sm:$0xff]
        %v1110 = vld [vmem:[%s492 + $0x28] sm:$0xff]
        %v1111 = vld [vmem:[%s492 + $0x30] sm:$0xff]
        %v1112 = vld [vmem:[%s492 + $0x38] sm:$0xff]
        %vm1113 = vcmask 523264
        %v1115 = vsel %vm1113, %v1103, 0
        %v1118 = vsel %vm1113, %v1104, 0
        %1120 = vmatpush.msra.mxu0 0.0
        %1121 = vmatpush.msra.mxu0 0.0
        %1122 = vmatpush.msra.mxu0 0.0
        %1123 = vmatpush.msra.mxu0 0.0
        %1124 = vmatpush.msra.mxu0 0.0
        %1125 = vmatpush.msra.mxu0 0.0
        %1126 = vmatpush.msra.mxu0 0.0
        %1127 = vmatpush.msra.mxu0 0.0
        %1128 = vmatpush.msra.mxu0 %v1112
        %1129 = vmatpush.msra.mxu0 %v1111
        %1130 = vmatpush.msra.mxu0 %v1110
        %1131 = vmatpush.msra.mxu0 %v1109
        %1132 = vmatpush.msra.mxu0 %v1108
        %1133 = vmatpush.msra.mxu0 %v1107
        %1134 = vmatpush.msra.mxu0 %v1106
        %1135 = vmatpush.msra.mxu0 %v1105
        %1136 = vmatmul.f32.gmra.mxu0 %v1115
        %v1137 = vpop.f32.mrf.mxu0
        %v1138 = vadd.f32 0.0, %v1137
        %1139 = vmatmul.f32.gmra.mxu0 %v1118
        %v1140 = vpop.f32.mrf.mxu0
        %v1141 = vadd.f32 0.0, %v1140
        %1142 = vdwg.mxu0
        %v1143 = vadd.f32 %v1017, %v1138
        %v1144 = vadd.f32 %v1018, %v1141
        %v1145 = vperm.slane %v624, 5
        %v1146 = vadd.f32 %v1143, %v1145
        %v1147 = vadd.f32 %v1144, %v1145
        %1148 = vst.msk [vmem:[#allocation2] sm:$0xff] %vm625, %v1146
        %1149 = vst.msk [vmem:[#allocation2 + $0x8] sm:$0xff] %vm625, %v1147
        %p1150 = scmp.eq.s32.totalorder %s31, 1
        // Predicated region
        $region73: #{tpu_custom_call.1} parent=59 // pred_check
          %p1151 = pneg %p1150
        $region74: #{tpu_custom_call.1} parent=59 // pred_check_branch
          %1153 = sbr.rel (%p1151) target = $region76
        $region75: #{tpu_custom_call.1} parent=59 // pred_region
          %vm1154 = vcmask 261124
          %1155 = vst.msk [vmem:[%s467 - $0x4] sm:$0xf0] %vm1154, %v1147
        $region76: #{tpu_custom_call.1} parent=59 // pred_fallthru
          _
        %s1156 = sand.u32 %s286, 1
        %s1157 = scalar_lea.sflag [#allocation7], %s1156
        %s1158 = sand.u32 %s286, 1
        %s1159 = smul.addr %s1158, 4
        %s1160 = scalar_lea.vmem [#allocation10], %s1159
        // Predicated region
        $region77: #{tpu_custom_call.1} parent=59 // pred_check
          %p1161 = pneg %p296
        $region78: #{tpu_custom_call.1} parent=59 // pred_check_branch
          %1163 = sbr.rel (%p1161) target = $region80
        $region79: #{tpu_custom_call.1} parent=59 // pred_region
          %1165 = vsyncadd %s1157, 0
          %s1166 = smul.addr %s30, 4
          %s1167 = scalar_lea.hbm %s10, %s1166
          %s1169 = sshll.u32 %s1160, 4
          %s1170 = int_to_ptr.vmem [resolvable:$true] %s1169
          %s1171 = sshll.u32 %s1167, 4
          %s1172 = int_to_ptr.hbm [resolvable:$true] %s1171
          %1174 = dma.vmem_to_hbm [thread:$0]  %s1170, 64, %s1172, %s1157
        $region80: #{tpu_custom_call.1} parent=59 // pred_fallthru
          _
      $region60: #{tpu_custom_call.1} parent=5 // pred_fallthru
        _
      %p1175 = scmp.le.s32.totalorder 2, %s21
      // Predicated region
      $region81: #{tpu_custom_call.1} parent=5 // pred_check
        %p1176 = pneg %p1175
      $region82: #{tpu_custom_call.1} parent=5 // pred_check_branch
        %1178 = sbr.rel (%p1176) target = $region84
      $region83: #{tpu_custom_call.1} parent=5 // pred_region
        %s1179 = ssub.s32 %s21, 2
        // Predicated region
        $region85: #{tpu_custom_call.1} parent=83 // pred_check
          %p1180 = pneg %p302
        $region86: #{tpu_custom_call.1} parent=83 // pred_check_branch
          %1182 = sbr.rel (%p1180) target = $region88
        $region87: #{tpu_custom_call.1} parent=83 // pred_region
          %s1183 = sand.u32 %s287, 1
          %s1184 = scalar_lea.sflag [#allocation7], %s1183
          %s1185 = sand.u32 %s287, 1
          %s1186 = smul.addr %s1185, 4
          %s1187 = scalar_lea.vmem [#allocation10], %s1186
          %1189 = dma.done %s1184, 64
        $region88: #{tpu_custom_call.1} parent=83 // pred_fallthru
          _
      $region84: #{tpu_custom_call.1} parent=5 // pred_fallthru
        _
    $region6: #{tpu_custom_call.1} parent=1 // loop_footer
      %s25 = sadd.s32 1, %s21
    $region7: #{tpu_custom_call.1} parent=1 // loop_footer_branch
      %20 = sbr.rel target = $region3
    $region8: #{tpu_custom_call.1} parent=1 // loop_exit
      _
    %1190 = vsyncpa [#allocation6], 1
    %s1191 = scalar_lea.sflag [#allocation6], 1
    %1192 = vsyncpa %s1191, 1
    %1193 = vsyncpa [#allocation9], 1
    %1194 = vsyncpa [#allocation7], 1
    %s1195 = scalar_lea.sflag [#allocation7], 1
    %1196 = vsyncpa %s1195, 1

</llo_original>
